<compile_context>
chip_gen: v7x
topology: tpu7x:2x2x1
jax: 0.10.0
libtpu: 0.0.40
codegen_flags: <defaults>
</compile_context>

<pallas_src>
import functools

import jax
import jax.numpy as jnp
import numpy as np
from jax.experimental import pallas as pl
from jax.experimental.pallas import tpu as pltpu


def _cdiv(a, b):
    return (a + b - 1) // b


def _round_up(a, b):
    return _cdiv(a, b) * b


def node_edge_average_kernel(nh_ref,       # SMEM  [n_pad*K] int32 (scalar prefetch)
                             x_ref,        # VMEM  [n_pad, D+2] f32, full node table
                             w_ref,        # VMEM  [2*(D+2), O_pad] bf16 fused weight
                             b_ref,        # VMEM  [1, O_pad] f32
                             out_ref,      # VMEM  [TILE_N, O_pad] f32
                             nbr_ref,      # VMEM scratch [TILE_N, D+2] f32
                             *, tile_n, nh_size):
    t = pl.program_id(0)
    row0 = pl.multiple_of(t * tile_n, 8)

    # ---- O(TILE_N * K) neighbor gather, 8 rows (one sublane group) per store.
    # Indices come from SMEM; 1/K is folded into the weight (no scaling here).
    def gather_group(g, carry):
        g8 = pl.multiple_of(g * 8, 8)
        rows = []
        for r in range(8):                                        # static, small
            base = (row0 + g8 + r) * nh_size
            acc = x_ref[pl.ds(nh_ref[base], 1), :]                # first neighbor
            for kk in range(1, nh_size):                          # static K, unrolled
                acc = acc + x_ref[pl.ds(nh_ref[base + kk], 1), :]
            rows.append(acc)
        nbr_ref[pl.ds(g8, 8), :] = jnp.concatenate(rows, axis=0)  # dense 8-row store
        return carry

    jax.lax.fori_loop(0, tile_n // 8, gather_group, 0)            # not unrolled

    # ---- Single fused MXU matmul (bf16 operands, f32 accumulation). ----
    x_tile = x_ref[pl.ds(row0, tile_n), :]                        # [TILE_N, D+2] f32
    xin = jnp.concatenate([x_tile, nbr_ref[...]], axis=1)         # [TILE_N, 2*(D+2)]
    z = jnp.dot(xin.astype(jnp.bfloat16), w_ref[...],
                preferred_element_type=jnp.float32)               # zc + ze_mean + zn_mean
    z = z + b_ref[...]                                            # bias broadcast
    out_ref[...] = jnp.maximum(z, 0.0)                            # ReLU; dropout = id


def node_edge_average(vertex, edge, nh_indices, wc, wn, we, bias):
    n, in_dim = vertex.shape
    k = nh_indices.shape[1]
    out_dim = wc.shape[1]
    d_aug = in_dim + 2
    o_pad = _round_up(out_dim, 128)          # lane-dense output / weight columns

    try:
        kind = jax.devices()[0].device_kind.lower()
    except Exception:
        kind = ""
    is_v5e = ("v5e" in kind) or ("v5 lite" in kind) or ("v5litepod" in kind)
    is_v7 = ("v7" in kind) or ("tpu7" in kind)
    target_tile = 128 if is_v5e else 256     # v5e MXU M=128; v6e/v7x M=256

    # Node tile: as big as the target, but keep the grid >= 2 steps for small
    # graphs so v7x's two TensorCores both get work.  Always a multiple of 8.
    tile_n = min(target_tile, max(8, _round_up(_cdiv(n, 2), 8)))
    n_pad = _round_up(n, tile_n)
    grid = n_pad // tile_n

    # ---- Host-side prep (O(N) XLA work, once). ----
    # Fuse center + edge paths through one augmented operand:
    #   x_aug = [vertex | edge.sum(1)]   (gathered neighbor rows reuse it as-is)
    #   W     = [[Wc ; We/K] ; [Wn/K ; 0]]   (1/K folded into the weights)
    edge_sum = jnp.sum(edge.astype(jnp.float32), axis=1)                      # [N, 2]
    x_aug = jnp.concatenate([vertex.astype(jnp.float32), edge_sum], axis=1)   # [N, D+2]
    x_aug = jnp.pad(x_aug, ((0, n_pad - n), (0, 0)))

    w_top = jnp.concatenate([wc, we / k], axis=0)                             # [D+2, O]
    w_bot = jnp.concatenate([wn / k, jnp.zeros((2, out_dim), jnp.float32)], 0)
    w = jnp.concatenate([w_top, w_bot], axis=0)                               # [2*(D+2), O]
    w_bf = jnp.pad(w, ((0, 0), (0, o_pad - out_dim))).astype(jnp.bfloat16)
    bias_p = jnp.pad(bias.reshape(1, out_dim).astype(jnp.float32),
                     ((0, 0), (0, o_pad - out_dim)))

    # Clamp ids so stray indices cannot read out of bounds (TPU has no runtime
    # bounds check on VMEM refs); padded rows gather node 0 and are sliced off.
    # TODO(synk): a -1 "no neighbor" sentinel would need masking, not clamping.
    nh = jnp.clip(nh_indices.astype(jnp.int32), 0, n - 1)
    nh = jnp.pad(nh, ((0, n_pad - n), (0, 0)))
    nh_flat = nh.reshape(-1)                                                  # [n_pad*K]
    # TODO(synk): for very large N*K, stream per-tile index blocks through SMEM
    # (BlockSpec with memory_space=SMEM) instead of prefetching the whole table.

    # ---- Per-chip VMEM budget: real footprint + headroom, capped to physical.
    lane_d = _round_up(d_aug, 128)
    table_b = _round_up(n_pad, 8) * lane_d * 4
    w_b = _round_up(2 * d_aug, 16) * o_pad * 2
    out_b = tile_n * o_pad * 4
    scratch_b = tile_n * lane_d * 4
    need = (2 * table_b + 2 * w_b + 2 * 8 * o_pad * 4 + 2 * out_b
            + scratch_b + (8 << 20))
    try:
        phys = int(pltpu.get_tpu_info().vmem_capacity_bytes)
    except Exception:
        phys = (64 << 20) if is_v7 else (128 << 20)
    cap = max(32 << 20, phys - (16 << 20))
    vmem_limit = int(min(max(need, 32 << 20), cap))
    # TODO(synk): once the table outgrows VMEM (esp. v7x 64 MiB/TC), keep x in
    # HBM (memory_space=pl.ANY) and gather rows via double-buffered make_async_copy.

    kernel = functools.partial(node_edge_average_kernel, tile_n=tile_n, nh_size=k)

    def build(single_buffer_consts):
        def const_spec(shape):
            kwargs = {}
            if single_buffer_consts:
                # Block index never changes -> one VMEM copy is enough.
                kwargs["pipeline_mode"] = pl.Buffered(1)
            nd = len(shape)
            return pl.BlockSpec(shape, lambda i, nh_s: (0,) * nd, **kwargs)

        return pl.pallas_call(
            kernel,
            out_shape=jax.ShapeDtypeStruct((n_pad, o_pad), jnp.float32),
            grid_spec=pltpu.PrefetchScalarGridSpec(
                num_scalar_prefetch=1,
                grid=(grid,),
                in_specs=[
                    const_spec((n_pad, d_aug)),        # resident node table (f32)
                    const_spec((2 * d_aug, o_pad)),    # fused weight (bf16)
                    const_spec((1, o_pad)),            # bias (f32)
                ],
                out_specs=pl.BlockSpec((tile_n, o_pad), lambda i, nh_s: (i, 0)),
                scratch_shapes=[pltpu.VMEM((tile_n, d_aug), jnp.float32)],
            ),
            compiler_params=pltpu.CompilerParams(
                dimension_semantics=("parallel",),     # shard node tiles across TCs
                vmem_limit_bytes=vmem_limit,
            ),
        )

    try:
        out_padded = build(True)(nh_flat, x_aug, w_bf, bias_p)
    except Exception:
        # pipeline_mode=pl.Buffered(1) unavailable: fall back to default buffering.
        out_padded = build(False)(nh_flat, x_aug, w_bf, bias_p)

    return out_padded[:n, :out_dim]


def ref_forward(vertex, edge, nh_indices, wc, wn, we, bias):
    """Pure-JAX (f32) mirror of the PyTorch forward (dropout = identity)."""
    k = nh_indices.shape[1]
    zc = vertex @ wc
    zn = vertex @ wn
    ze = jnp.tensordot(edge, we, axes=([-1], [0]))
    zn = zn[nh_indices]              # [N, K, O]
    zn = zn.sum(1) / k
    ze = ze.sum(1) / k
    z = zc + zn + ze + bias
    return jax.nn.relu(z)


if __name__ == "__main__":
    # Small shapes consistent with the module: 20 nodes, in_dim 32, out_dim 32,
    # 4 neighbors per node (N deliberately not a tile multiple to exercise padding).
    N, IN_DIM, OUT_DIM, K = 20, 32, 32, 4

    key = jax.random.PRNGKey(0)
    kc, kn, ke, kv, kedge, kidx = jax.random.split(key, 6)

    # Deterministic parameter init mirroring reset_parameters():
    center_std = 1.0 / IN_DIM
    nh_std = 1.0 / IN_DIM
    edge_std = 1.0 / 2.0
    wc = jax.random.uniform(kc, (IN_DIM, OUT_DIM), jnp.float32, -center_std, center_std)
    wn = jax.random.uniform(kn, (IN_DIM, OUT_DIM), jnp.float32, -nh_std, nh_std)
    we = jax.random.uniform(ke, (2, OUT_DIM), jnp.float32, -edge_std, edge_std)
    bias = jnp.zeros((OUT_DIM,), jnp.float32)

    # Inputs
    vertex = jax.random.normal(kv, (N, IN_DIM), jnp.float32)
    edge = jax.random.normal(kedge, (N, K, 2), jnp.float32)
    nh_indices = jax.random.randint(kidx, (N, K), 0, N, jnp.int32)

    out = node_edge_average(vertex, edge, nh_indices, wc, wn, we, bias)
    out = jax.block_until_ready(out)

    ref = ref_forward(vertex, edge, nh_indices, wc, wn, we, bias)
    assert out.shape == (N, OUT_DIM)
    # bf16 MXU operands (f32 accumulation) vs f32 reference -> bf16-level tolerance.
    err = np.max(np.abs(np.asarray(out) - np.asarray(ref)))
    assert np.allclose(np.asarray(out), np.asarray(ref), rtol=2e-2, atol=2e-2), err

    print("KERNEL_OK")
</pallas_src>

<mosaic_0001>
module attributes {stable_mosaic.version = 11 : i64} {
  func.func @node_edge_average_kernel(%arg0: i32, %arg1: memref<128xi32, #tpu.memory_space<smem>>, %arg2: memref<32x34xf32, #tpu.memory_space<vmem>>, %arg3: memref<68x128xbf16, #tpu.memory_space<vmem>>, %arg4: memref<1x128xf32, #tpu.memory_space<vmem>>, %arg5: memref<16x128xf32, #tpu.memory_space<vmem>>, %arg6: memref<16x34xf32, #tpu.memory_space<vmem>>) attributes {dimension_semantics = [#tpu.dimension_semantics<parallel>], iteration_bounds = array<i64: 2>, scalar_prefetch = 1 : i64, scratch_operands = 1 : i64, tpu.core_type = #tpu.core_type<tc>, window_params = [{pipeline_mode = #tpu.pipeline_mode<synchronous>, transform_indices = @transform_0, window_bounds = array<i64: 32, 34>}, {pipeline_mode = #tpu.pipeline_mode<synchronous>, transform_indices = @transform_1, window_bounds = array<i64: 68, 128>}, {pipeline_mode = #tpu.pipeline_mode<synchronous>, transform_indices = @transform_2, window_bounds = array<i64: 1, 128>}, {transform_indices = @transform_3, window_bounds = array<i64: 16, 128>}]} {
    %c16_i32 = arith.constant 16 : i32
    %0 = arith.muli %arg0, %c16_i32 : i32
    %1 = tpu.assume_multiple %0, 8 : i32
    %c0_i32 = arith.constant 0 : i32
    %c2_i32 = arith.constant 2 : i32
    %2 = arith.addi %c0_i32, %c2_i32 : i32
    %c1_i32 = arith.constant 1 : i32
    scf.for %arg7 = %c0_i32 to %2 step %c1_i32  : i32 {
      %c8_i32 = arith.constant 8 : i32
      %16 = arith.muli %arg7, %c8_i32 : i32
      %17 = tpu.assume_multiple %16, 8 : i32
      %18 = arith.addi %1, %17 : i32
      %c0_i32_10 = arith.constant 0 : i32
      %19 = arith.addi %18, %c0_i32_10 : i32
      %c4_i32 = arith.constant 4 : i32
      %20 = arith.muli %19, %c4_i32 : i32
      %21 = arith.index_cast %20 : i32 to index
      %22 = memref.load %arg1[%21] : memref<128xi32, #tpu.memory_space<smem>>
      %23 = arith.index_cast %22 : i32 to index
      %c0_11 = arith.constant 0 : index
      %24 = vector.load %arg2[%23, %c0_11] : memref<32x34xf32, #tpu.memory_space<vmem>>, vector<1x34xf32>
      %c1_i32_12 = arith.constant 1 : i32
      %25 = arith.addi %20, %c1_i32_12 : i32
      %26 = arith.index_cast %25 : i32 to index
      %27 = memref.load %arg1[%26] : memref<128xi32, #tpu.memory_space<smem>>
      %28 = arith.index_cast %27 : i32 to index
      %c0_13 = arith.constant 0 : index
      %29 = vector.load %arg2[%28, %c0_13] : memref<32x34xf32, #tpu.memory_space<vmem>>, vector<1x34xf32>
      %30 = arith.addf %24, %29 : vector<1x34xf32>
      %c2_i32_14 = arith.constant 2 : i32
      %31 = arith.addi %20, %c2_i32_14 : i32
      %32 = arith.index_cast %31 : i32 to index
      %33 = memref.load %arg1[%32] : memref<128xi32, #tpu.memory_space<smem>>
      %34 = arith.index_cast %33 : i32 to index
      %c0_15 = arith.constant 0 : index
      %35 = vector.load %arg2[%34, %c0_15] : memref<32x34xf32, #tpu.memory_space<vmem>>, vector<1x34xf32>
      %36 = arith.addf %30, %35 : vector<1x34xf32>
      %c3_i32 = arith.constant 3 : i32
      %37 = arith.addi %20, %c3_i32 : i32
      %38 = arith.index_cast %37 : i32 to index
      %39 = memref.load %arg1[%38] : memref<128xi32, #tpu.memory_space<smem>>
      %40 = arith.index_cast %39 : i32 to index
      %c0_16 = arith.constant 0 : index
      %41 = vector.load %arg2[%40, %c0_16] : memref<32x34xf32, #tpu.memory_space<vmem>>, vector<1x34xf32>
      %42 = arith.addf %36, %41 : vector<1x34xf32>
      %43 = arith.addi %1, %17 : i32
      %c1_i32_17 = arith.constant 1 : i32
      %44 = arith.addi %43, %c1_i32_17 : i32
      %c4_i32_18 = arith.constant 4 : i32
      %45 = arith.muli %44, %c4_i32_18 : i32
      %46 = arith.index_cast %45 : i32 to index
      %47 = memref.load %arg1[%46] : memref<128xi32, #tpu.memory_space<smem>>
      %48 = arith.index_cast %47 : i32 to index
      %c0_19 = arith.constant 0 : index
      %49 = vector.load %arg2[%48, %c0_19] : memref<32x34xf32, #tpu.memory_space<vmem>>, vector<1x34xf32>
      %c1_i32_20 = arith.constant 1 : i32
      %50 = arith.addi %45, %c1_i32_20 : i32
      %51 = arith.index_cast %50 : i32 to index
      %52 = memref.load %arg1[%51] : memref<128xi32, #tpu.memory_space<smem>>
      %53 = arith.index_cast %52 : i32 to index
      %c0_21 = arith.constant 0 : index
      %54 = vector.load %arg2[%53, %c0_21] : memref<32x34xf32, #tpu.memory_space<vmem>>, vector<1x34xf32>
      %55 = arith.addf %49, %54 : vector<1x34xf32>
      %c2_i32_22 = arith.constant 2 : i32
      %56 = arith.addi %45, %c2_i32_22 : i32
      %57 = arith.index_cast %56 : i32 to index
      %58 = memref.load %arg1[%57] : memref<128xi32, #tpu.memory_space<smem>>
      %59 = arith.index_cast %58 : i32 to index
      %c0_23 = arith.constant 0 : index
      %60 = vector.load %arg2[%59, %c0_23] : memref<32x34xf32, #tpu.memory_space<vmem>>, vector<1x34xf32>
      %61 = arith.addf %55, %60 : vector<1x34xf32>
      %c3_i32_24 = arith.constant 3 : i32
      %62 = arith.addi %45, %c3_i32_24 : i32
      %63 = arith.index_cast %62 : i32 to index
      %64 = memref.load %arg1[%63] : memref<128xi32, #tpu.memory_space<smem>>
      %65 = arith.index_cast %64 : i32 to index
      %c0_25 = arith.constant 0 : index
      %66 = vector.load %arg2[%65, %c0_25] : memref<32x34xf32, #tpu.memory_space<vmem>>, vector<1x34xf32>
      %67 = arith.addf %61, %66 : vector<1x34xf32>
      %68 = arith.addi %1, %17 : i32
      %c2_i32_26 = arith.constant 2 : i32
      %69 = arith.addi %68, %c2_i32_26 : i32
      %c4_i32_27 = arith.constant 4 : i32
      %70 = arith.muli %69, %c4_i32_27 : i32
      %71 = arith.index_cast %70 : i32 to index
      %72 = memref.load %arg1[%71] : memref<128xi32, #tpu.memory_space<smem>>
      %73 = arith.index_cast %72 : i32 to index
      %c0_28 = arith.constant 0 : index
      %74 = vector.load %arg2[%73, %c0_28] : memref<32x34xf32, #tpu.memory_space<vmem>>, vector<1x34xf32>
      %c1_i32_29 = arith.constant 1 : i32
      %75 = arith.addi %70, %c1_i32_29 : i32
      %76 = arith.index_cast %75 : i32 to index
      %77 = memref.load %arg1[%76] : memref<128xi32, #tpu.memory_space<smem>>
      %78 = arith.index_cast %77 : i32 to index
      %c0_30 = arith.constant 0 : index
      %79 = vector.load %arg2[%78, %c0_30] : memref<32x34xf32, #tpu.memory_space<vmem>>, vector<1x34xf32>
      %80 = arith.addf %74, %79 : vector<1x34xf32>
      %c2_i32_31 = arith.constant 2 : i32
      %81 = arith.addi %70, %c2_i32_31 : i32
      %82 = arith.index_cast %81 : i32 to index
      %83 = memref.load %arg1[%82] : memref<128xi32, #tpu.memory_space<smem>>
      %84 = arith.index_cast %83 : i32 to index
      %c0_32 = arith.constant 0 : index
      %85 = vector.load %arg2[%84, %c0_32] : memref<32x34xf32, #tpu.memory_space<vmem>>, vector<1x34xf32>
      %86 = arith.addf %80, %85 : vector<1x34xf32>
      %c3_i32_33 = arith.constant 3 : i32
      %87 = arith.addi %70, %c3_i32_33 : i32
      %88 = arith.index_cast %87 : i32 to index
      %89 = memref.load %arg1[%88] : memref<128xi32, #tpu.memory_space<smem>>
      %90 = arith.index_cast %89 : i32 to index
      %c0_34 = arith.constant 0 : index
      %91 = vector.load %arg2[%90, %c0_34] : memref<32x34xf32, #tpu.memory_space<vmem>>, vector<1x34xf32>
      %92 = arith.addf %86, %91 : vector<1x34xf32>
      %93 = arith.addi %1, %17 : i32
      %c3_i32_35 = arith.constant 3 : i32
      %94 = arith.addi %93, %c3_i32_35 : i32
      %c4_i32_36 = arith.constant 4 : i32
      %95 = arith.muli %94, %c4_i32_36 : i32
      %96 = arith.index_cast %95 : i32 to index
      %97 = memref.load %arg1[%96] : memref<128xi32, #tpu.memory_space<smem>>
      %98 = arith.index_cast %97 : i32 to index
      %c0_37 = arith.constant 0 : index
      %99 = vector.load %arg2[%98, %c0_37] : memref<32x34xf32, #tpu.memory_space<vmem>>, vector<1x34xf32>
      %c1_i32_38 = arith.constant 1 : i32
      %100 = arith.addi %95, %c1_i32_38 : i32
      %101 = arith.index_cast %100 : i32 to index
      %102 = memref.load %arg1[%101] : memref<128xi32, #tpu.memory_space<smem>>
      %103 = arith.index_cast %102 : i32 to index
      %c0_39 = arith.constant 0 : index
      %104 = vector.load %arg2[%103, %c0_39] : memref<32x34xf32, #tpu.memory_space<vmem>>, vector<1x34xf32>
      %105 = arith.addf %99, %104 : vector<1x34xf32>
      %c2_i32_40 = arith.constant 2 : i32
      %106 = arith.addi %95, %c2_i32_40 : i32
      %107 = arith.index_cast %106 : i32 to index
      %108 = memref.load %arg1[%107] : memref<128xi32, #tpu.memory_space<smem>>
      %109 = arith.index_cast %108 : i32 to index
      %c0_41 = arith.constant 0 : index
      %110 = vector.load %arg2[%109, %c0_41] : memref<32x34xf32, #tpu.memory_space<vmem>>, vector<1x34xf32>
      %111 = arith.addf %105, %110 : vector<1x34xf32>
      %c3_i32_42 = arith.constant 3 : i32
      %112 = arith.addi %95, %c3_i32_42 : i32
      %113 = arith.index_cast %112 : i32 to index
      %114 = memref.load %arg1[%113] : memref<128xi32, #tpu.memory_space<smem>>
      %115 = arith.index_cast %114 : i32 to index
      %c0_43 = arith.constant 0 : index
      %116 = vector.load %arg2[%115, %c0_43] : memref<32x34xf32, #tpu.memory_space<vmem>>, vector<1x34xf32>
      %117 = arith.addf %111, %116 : vector<1x34xf32>
      %118 = arith.addi %1, %17 : i32
      %c4_i32_44 = arith.constant 4 : i32
      %119 = arith.addi %118, %c4_i32_44 : i32
      %c4_i32_45 = arith.constant 4 : i32
      %120 = arith.muli %119, %c4_i32_45 : i32
      %121 = arith.index_cast %120 : i32 to index
      %122 = memref.load %arg1[%121] : memref<128xi32, #tpu.memory_space<smem>>
      %123 = arith.index_cast %122 : i32 to index
      %c0_46 = arith.constant 0 : index
      %124 = vector.load %arg2[%123, %c0_46] : memref<32x34xf32, #tpu.memory_space<vmem>>, vector<1x34xf32>
      %c1_i32_47 = arith.constant 1 : i32
      %125 = arith.addi %120, %c1_i32_47 : i32
      %126 = arith.index_cast %125 : i32 to index
      %127 = memref.load %arg1[%126] : memref<128xi32, #tpu.memory_space<smem>>
      %128 = arith.index_cast %127 : i32 to index
      %c0_48 = arith.constant 0 : index
      %129 = vector.load %arg2[%128, %c0_48] : memref<32x34xf32, #tpu.memory_space<vmem>>, vector<1x34xf32>
      %130 = arith.addf %124, %129 : vector<1x34xf32>
      %c2_i32_49 = arith.constant 2 : i32
      %131 = arith.addi %120, %c2_i32_49 : i32
      %132 = arith.index_cast %131 : i32 to index
      %133 = memref.load %arg1[%132] : memref<128xi32, #tpu.memory_space<smem>>
      %134 = arith.index_cast %133 : i32 to index
      %c0_50 = arith.constant 0 : index
      %135 = vector.load %arg2[%134, %c0_50] : memref<32x34xf32, #tpu.memory_space<vmem>>, vector<1x34xf32>
      %136 = arith.addf %130, %135 : vector<1x34xf32>
      %c3_i32_51 = arith.constant 3 : i32
      %137 = arith.addi %120, %c3_i32_51 : i32
      %138 = arith.index_cast %137 : i32 to index
      %139 = memref.load %arg1[%138] : memref<128xi32, #tpu.memory_space<smem>>
      %140 = arith.index_cast %139 : i32 to index
      %c0_52 = arith.constant 0 : index
      %141 = vector.load %arg2[%140, %c0_52] : memref<32x34xf32, #tpu.memory_space<vmem>>, vector<1x34xf32>
      %142 = arith.addf %136, %141 : vector<1x34xf32>
      %143 = arith.addi %1, %17 : i32
      %c5_i32 = arith.constant 5 : i32
      %144 = arith.addi %143, %c5_i32 : i32
      %c4_i32_53 = arith.constant 4 : i32
      %145 = arith.muli %144, %c4_i32_53 : i32
      %146 = arith.index_cast %145 : i32 to index
      %147 = memref.load %arg1[%146] : memref<128xi32, #tpu.memory_space<smem>>
      %148 = arith.index_cast %147 : i32 to index
      %c0_54 = arith.constant 0 : index
      %149 = vector.load %arg2[%148, %c0_54] : memref<32x34xf32, #tpu.memory_space<vmem>>, vector<1x34xf32>
      %c1_i32_55 = arith.constant 1 : i32
      %150 = arith.addi %145, %c1_i32_55 : i32
      %151 = arith.index_cast %150 : i32 to index
      %152 = memref.load %arg1[%151] : memref<128xi32, #tpu.memory_space<smem>>
      %153 = arith.index_cast %152 : i32 to index
      %c0_56 = arith.constant 0 : index
      %154 = vector.load %arg2[%153, %c0_56] : memref<32x34xf32, #tpu.memory_space<vmem>>, vector<1x34xf32>
      %155 = arith.addf %149, %154 : vector<1x34xf32>
      %c2_i32_57 = arith.constant 2 : i32
      %156 = arith.addi %145, %c2_i32_57 : i32
      %157 = arith.index_cast %156 : i32 to index
      %158 = memref.load %arg1[%157] : memref<128xi32, #tpu.memory_space<smem>>
      %159 = arith.index_cast %158 : i32 to index
      %c0_58 = arith.constant 0 : index
      %160 = vector.load %arg2[%159, %c0_58] : memref<32x34xf32, #tpu.memory_space<vmem>>, vector<1x34xf32>
      %161 = arith.addf %155, %160 : vector<1x34xf32>
      %c3_i32_59 = arith.constant 3 : i32
      %162 = arith.addi %145, %c3_i32_59 : i32
      %163 = arith.index_cast %162 : i32 to index
      %164 = memref.load %arg1[%163] : memref<128xi32, #tpu.memory_space<smem>>
      %165 = arith.index_cast %164 : i32 to index
      %c0_60 = arith.constant 0 : index
      %166 = vector.load %arg2[%165, %c0_60] : memref<32x34xf32, #tpu.memory_space<vmem>>, vector<1x34xf32>
      %167 = arith.addf %161, %166 : vector<1x34xf32>
      %168 = arith.addi %1, %17 : i32
      %c6_i32 = arith.constant 6 : i32
      %169 = arith.addi %168, %c6_i32 : i32
      %c4_i32_61 = arith.constant 4 : i32
      %170 = arith.muli %169, %c4_i32_61 : i32
      %171 = arith.index_cast %170 : i32 to index
      %172 = memref.load %arg1[%171] : memref<128xi32, #tpu.memory_space<smem>>
      %173 = arith.index_cast %172 : i32 to index
      %c0_62 = arith.constant 0 : index
      %174 = vector.load %arg2[%173, %c0_62] : memref<32x34xf32, #tpu.memory_space<vmem>>, vector<1x34xf32>
      %c1_i32_63 = arith.constant 1 : i32
      %175 = arith.addi %170, %c1_i32_63 : i32
      %176 = arith.index_cast %175 : i32 to index
      %177 = memref.load %arg1[%176] : memref<128xi32, #tpu.memory_space<smem>>
      %178 = arith.index_cast %177 : i32 to index
      %c0_64 = arith.constant 0 : index
      %179 = vector.load %arg2[%178, %c0_64] : memref<32x34xf32, #tpu.memory_space<vmem>>, vector<1x34xf32>
      %180 = arith.addf %174, %179 : vector<1x34xf32>
      %c2_i32_65 = arith.constant 2 : i32
      %181 = arith.addi %170, %c2_i32_65 : i32
      %182 = arith.index_cast %181 : i32 to index
      %183 = memref.load %arg1[%182] : memref<128xi32, #tpu.memory_space<smem>>
      %184 = arith.index_cast %183 : i32 to index
      %c0_66 = arith.constant 0 : index
      %185 = vector.load %arg2[%184, %c0_66] : memref<32x34xf32, #tpu.memory_space<vmem>>, vector<1x34xf32>
      %186 = arith.addf %180, %185 : vector<1x34xf32>
      %c3_i32_67 = arith.constant 3 : i32
      %187 = arith.addi %170, %c3_i32_67 : i32
      %188 = arith.index_cast %187 : i32 to index
      %189 = memref.load %arg1[%188] : memref<128xi32, #tpu.memory_space<smem>>
      %190 = arith.index_cast %189 : i32 to index
      %c0_68 = arith.constant 0 : index
      %191 = vector.load %arg2[%190, %c0_68] : memref<32x34xf32, #tpu.memory_space<vmem>>, vector<1x34xf32>
      %192 = arith.addf %186, %191 : vector<1x34xf32>
      %193 = arith.addi %1, %17 : i32
      %c7_i32 = arith.constant 7 : i32
      %194 = arith.addi %193, %c7_i32 : i32
      %c4_i32_69 = arith.constant 4 : i32
      %195 = arith.muli %194, %c4_i32_69 : i32
      %196 = arith.index_cast %195 : i32 to index
      %197 = memref.load %arg1[%196] : memref<128xi32, #tpu.memory_space<smem>>
      %198 = arith.index_cast %197 : i32 to index
      %c0_70 = arith.constant 0 : index
      %199 = vector.load %arg2[%198, %c0_70] : memref<32x34xf32, #tpu.memory_space<vmem>>, vector<1x34xf32>
      %c1_i32_71 = arith.constant 1 : i32
      %200 = arith.addi %195, %c1_i32_71 : i32
      %201 = arith.index_cast %200 : i32 to index
      %202 = memref.load %arg1[%201] : memref<128xi32, #tpu.memory_space<smem>>
      %203 = arith.index_cast %202 : i32 to index
      %c0_72 = arith.constant 0 : index
      %204 = vector.load %arg2[%203, %c0_72] : memref<32x34xf32, #tpu.memory_space<vmem>>, vector<1x34xf32>
      %205 = arith.addf %199, %204 : vector<1x34xf32>
      %c2_i32_73 = arith.constant 2 : i32
      %206 = arith.addi %195, %c2_i32_73 : i32
      %207 = arith.index_cast %206 : i32 to index
      %208 = memref.load %arg1[%207] : memref<128xi32, #tpu.memory_space<smem>>
      %209 = arith.index_cast %208 : i32 to index
      %c0_74 = arith.constant 0 : index
      %210 = vector.load %arg2[%209, %c0_74] : memref<32x34xf32, #tpu.memory_space<vmem>>, vector<1x34xf32>
      %211 = arith.addf %205, %210 : vector<1x34xf32>
      %c3_i32_75 = arith.constant 3 : i32
      %212 = arith.addi %195, %c3_i32_75 : i32
      %213 = arith.index_cast %212 : i32 to index
      %214 = memref.load %arg1[%213] : memref<128xi32, #tpu.memory_space<smem>>
      %215 = arith.index_cast %214 : i32 to index
      %c0_76 = arith.constant 0 : index
      %216 = vector.load %arg2[%215, %c0_76] : memref<32x34xf32, #tpu.memory_space<vmem>>, vector<1x34xf32>
      %217 = arith.addf %211, %216 : vector<1x34xf32>
      %218 = tpu.concatenate %42, %67, %92, %117, %142, %167, %192, %217 in 0 : vector<1x34xf32>, vector<1x34xf32>, vector<1x34xf32>, vector<1x34xf32>, vector<1x34xf32>, vector<1x34xf32>, vector<1x34xf32>, vector<1x34xf32> -> vector<8x34xf32>
      %219 = arith.index_cast %17 : i32 to index
      %c0_77 = arith.constant 0 : index
      %220 = vector.load %arg6[%219, %c0_77] : memref<16x34xf32, #tpu.memory_space<vmem>>, vector<8x34xf32>
      tpu.vector_store %arg6[%219, %c0_77], %218 {strides = array<i32>} : memref<16x34xf32, #tpu.memory_space<vmem>>, vector<8x34xf32>,
    }
    %c2_i32_0 = arith.constant 2 : i32
    %3 = arith.index_cast %1 : i32 to index
    %c0 = arith.constant 0 : index
    %4 = vector.load %arg2[%3, %c0] : memref<32x34xf32, #tpu.memory_space<vmem>>, vector<16x34xf32>
    %c0_1 = arith.constant 0 : index
    %c0_2 = arith.constant 0 : index
    %5 = vector.load %arg6[%c0_1, %c0_2] : memref<16x34xf32, #tpu.memory_space<vmem>>, vector<16x34xf32>
    %6 = tpu.concatenate %4, %5 in 1 : vector<16x34xf32>, vector<16x34xf32> -> vector<16x68xf32>
    %7 = arith.truncf %6 : vector<16x68xf32> to vector<16x68xbf16>
    %c0_3 = arith.constant 0 : index
    %c0_4 = arith.constant 0 : index
    %8 = vector.load %arg3[%c0_3, %c0_4] : memref<68x128xbf16, #tpu.memory_space<vmem>>, vector<68x128xbf16>
    %cst = arith.constant dense<0.000000e+00> : vector<16x128xf32>
    %9 = tpu.matmul %7, %8, %cst {dimension_numbers = #tpu.dot_dimension_numbers<[1], [0], [0], [1], [0, 0, 1, 1], [], []>} : vector<16x68xbf16>, vector<68x128xbf16>, vector<16x128xf32> -> vector<16x128xf32>
    %c0_5 = arith.constant 0 : index
    %c0_6 = arith.constant 0 : index
    %10 = vector.load %arg4[%c0_5, %c0_6] : memref<1x128xf32, #tpu.memory_space<vmem>>, vector<1x128xf32>
    %11 = vector.broadcast %10 : vector<1x128xf32> to vector<16x128xf32>
    %12 = arith.addf %9, %11 : vector<16x128xf32>
    %cst_7 = arith.constant 0.000000e+00 : f32
    %13 = vector.broadcast %cst_7 : f32 to vector<16x128xf32>
    %14 = arith.maximumf %12, %13 : vector<16x128xf32>
    %c0_8 = arith.constant 0 : index
    %c0_9 = arith.constant 0 : index
    %15 = vector.load %arg5[%c0_8, %c0_9] : memref<16x128xf32, #tpu.memory_space<vmem>>, vector<16x128xf32>
    tpu.vector_store %arg5[%c0_8, %c0_9], %14 {strides = array<i32>} : memref<16x128xf32, #tpu.memory_space<vmem>>, vector<16x128xf32>,
    return
  }
  func.func @transform_0(%arg0: i32, %arg1: memref<128xi32, #tpu.memory_space<smem>>) -> (i32, i32) {
    %c0_i32 = arith.constant 0 : i32
    %c0_i32_0 = arith.constant 0 : i32
    %c0_i32_1 = arith.constant 0 : i32
    return %c0_i32, %c0_i32_0 : i32, i32
  }
  func.func @transform_1(%arg0: i32, %arg1: memref<128xi32, #tpu.memory_space<smem>>) -> (i32, i32) {
    %c0_i32 = arith.constant 0 : i32
    %c0_i32_0 = arith.constant 0 : i32
    %c0_i32_1 = arith.constant 0 : i32
    return %c0_i32, %c0_i32_0 : i32, i32
  }
  func.func @transform_2(%arg0: i32, %arg1: memref<128xi32, #tpu.memory_space<smem>>) -> (i32, i32) {
    %c0_i32 = arith.constant 0 : i32
    %c0_i32_0 = arith.constant 0 : i32
    %c0_i32_1 = arith.constant 0 : i32
    return %c0_i32, %c0_i32_0 : i32, i32
  }
  func.func @transform_3(%arg0: i32, %arg1: memref<128xi32, #tpu.memory_space<smem>>) -> (i32, i32) {
    %c0_i32 = arith.constant 0 : i32
    %c0_i32_0 = arith.constant 0 : i32
    return %arg0, %c0_i32 : i32, i32
  }
}

module attributes {stable_mosaic.version = 11 : i64} {
  func.func @node_edge_average_kernel(%arg0: i32, %arg1: memref<128xi32, #tpu.memory_space<smem>>, %arg2: memref<32x34xf32, #tpu.memory_space<vmem>>, %arg3: memref<68x128xbf16, #tpu.memory_space<vmem>>, %arg4: memref<1x128xf32, #tpu.memory_space<vmem>>, %arg5: memref<16x128xf32, #tpu.memory_space<vmem>>, %arg6: memref<16x34xf32, #tpu.memory_space<vmem>>) attributes {dimension_semantics = [#tpu.dimension_semantics<parallel>], iteration_bounds = array<i64: 2>, scalar_prefetch = 1 : i64, scratch_operands = 1 : i64, tpu.core_type = #tpu.core_type<tc>, window_params = [{pipeline_mode = #tpu.pipeline_mode<synchronous>, transform_indices = @transform_0, window_bounds = array<i64: 32, 34>}, {pipeline_mode = #tpu.pipeline_mode<synchronous>, transform_indices = @transform_1, window_bounds = array<i64: 68, 128>}, {pipeline_mode = #tpu.pipeline_mode<synchronous>, transform_indices = @transform_2, window_bounds = array<i64: 1, 128>}, {transform_indices = @transform_3, window_bounds = array<i64: 16, 128>}]} {
    %c16_i32 = arith.constant 16 : i32
    %0 = arith.muli %arg0, %c16_i32 : i32
    %1 = tpu.assume_multiple %0, 8 : i32
    %c0_i32 = arith.constant 0 : i32
    %c2_i32 = arith.constant 2 : i32
    %2 = arith.addi %c0_i32, %c2_i32 : i32
    %c1_i32 = arith.constant 1 : i32
    scf.for %arg7 = %c0_i32 to %2 step %c1_i32  : i32 {
      %c8_i32 = arith.constant 8 : i32
      %16 = arith.muli %arg7, %c8_i32 : i32
      %17 = tpu.assume_multiple %16, 8 : i32
      %18 = arith.addi %1, %17 : i32
      %c0_i32_10 = arith.constant 0 : i32
      %19 = arith.addi %18, %c0_i32_10 : i32
      %c4_i32 = arith.constant 4 : i32
      %20 = arith.muli %19, %c4_i32 : i32
      %21 = arith.index_cast %20 : i32 to index
      %22 = memref.load %arg1[%21] : memref<128xi32, #tpu.memory_space<smem>>
      %23 = arith.index_cast %22 : i32 to index
      %c0_11 = arith.constant 0 : index
      %24 = vector.load %arg2[%23, %c0_11] : memref<32x34xf32, #tpu.memory_space<vmem>>, vector<1x34xf32>
      %c1_i32_12 = arith.constant 1 : i32
      %25 = arith.addi %20, %c1_i32_12 : i32
      %26 = arith.index_cast %25 : i32 to index
      %27 = memref.load %arg1[%26] : memref<128xi32, #tpu.memory_space<smem>>
      %28 = arith.index_cast %27 : i32 to index
      %c0_13 = arith.constant 0 : index
      %29 = vector.load %arg2[%28, %c0_13] : memref<32x34xf32, #tpu.memory_space<vmem>>, vector<1x34xf32>
      %30 = arith.addf %24, %29 : vector<1x34xf32>
      %c2_i32_14 = arith.constant 2 : i32
      %31 = arith.addi %20, %c2_i32_14 : i32
      %32 = arith.index_cast %31 : i32 to index
      %33 = memref.load %arg1[%32] : memref<128xi32, #tpu.memory_space<smem>>
      %34 = arith.index_cast %33 : i32 to index
      %c0_15 = arith.constant 0 : index
      %35 = vector.load %arg2[%34, %c0_15] : memref<32x34xf32, #tpu.memory_space<vmem>>, vector<1x34xf32>
      %36 = arith.addf %30, %35 : vector<1x34xf32>
      %c3_i32 = arith.constant 3 : i32
      %37 = arith.addi %20, %c3_i32 : i32
      %38 = arith.index_cast %37 : i32 to index
      %39 = memref.load %arg1[%38] : memref<128xi32, #tpu.memory_space<smem>>
      %40 = arith.index_cast %39 : i32 to index
      %c0_16 = arith.constant 0 : index
      %41 = vector.load %arg2[%40, %c0_16] : memref<32x34xf32, #tpu.memory_space<vmem>>, vector<1x34xf32>
      %42 = arith.addf %36, %41 : vector<1x34xf32>
      %43 = arith.addi %1, %17 : i32
      %c1_i32_17 = arith.constant 1 : i32
      %44 = arith.addi %43, %c1_i32_17 : i32
      %c4_i32_18 = arith.constant 4 : i32
      %45 = arith.muli %44, %c4_i32_18 : i32
      %46 = arith.index_cast %45 : i32 to index
      %47 = memref.load %arg1[%46] : memref<128xi32, #tpu.memory_space<smem>>
      %48 = arith.index_cast %47 : i32 to index
      %c0_19 = arith.constant 0 : index
      %49 = vector.load %arg2[%48, %c0_19] : memref<32x34xf32, #tpu.memory_space<vmem>>, vector<1x34xf32>
      %c1_i32_20 = arith.constant 1 : i32
      %50 = arith.addi %45, %c1_i32_20 : i32
      %51 = arith.index_cast %50 : i32 to index
      %52 = memref.load %arg1[%51] : memref<128xi32, #tpu.memory_space<smem>>
      %53 = arith.index_cast %52 : i32 to index
      %c0_21 = arith.constant 0 : index
      %54 = vector.load %arg2[%53, %c0_21] : memref<32x34xf32, #tpu.memory_space<vmem>>, vector<1x34xf32>
      %55 = arith.addf %49, %54 : vector<1x34xf32>
      %c2_i32_22 = arith.constant 2 : i32
      %56 = arith.addi %45, %c2_i32_22 : i32
      %57 = arith.index_cast %56 : i32 to index
      %58 = memref.load %arg1[%57] : memref<128xi32, #tpu.memory_space<smem>>
      %59 = arith.index_cast %58 : i32 to index
      %c0_23 = arith.constant 0 : index
      %60 = vector.load %arg2[%59, %c0_23] : memref<32x34xf32, #tpu.memory_space<vmem>>, vector<1x34xf32>
      %61 = arith.addf %55, %60 : vector<1x34xf32>
      %c3_i32_24 = arith.constant 3 : i32
      %62 = arith.addi %45, %c3_i32_24 : i32
      %63 = arith.index_cast %62 : i32 to index
      %64 = memref.load %arg1[%63] : memref<128xi32, #tpu.memory_space<smem>>
      %65 = arith.index_cast %64 : i32 to index
      %c0_25 = arith.constant 0 : index
      %66 = vector.load %arg2[%65, %c0_25] : memref<32x34xf32, #tpu.memory_space<vmem>>, vector<1x34xf32>
      %67 = arith.addf %61, %66 : vector<1x34xf32>
      %68 = arith.addi %1, %17 : i32
      %c2_i32_26 = arith.constant 2 : i32
      %69 = arith.addi %68, %c2_i32_26 : i32
      %c4_i32_27 = arith.constant 4 : i32
      %70 = arith.muli %69, %c4_i32_27 : i32
      %71 = arith.index_cast %70 : i32 to index
      %72 = memref.load %arg1[%71] : memref<128xi32, #tpu.memory_space<smem>>
      %73 = arith.index_cast %72 : i32 to index
      %c0_28 = arith.constant 0 : index
      %74 = vector.load %arg2[%73, %c0_28] : memref<32x34xf32, #tpu.memory_space<vmem>>, vector<1x34xf32>
      %c1_i32_29 = arith.constant 1 : i32
      %75 = arith.addi %70, %c1_i32_29 : i32
      %76 = arith.index_cast %75 : i32 to index
      %77 = memref.load %arg1[%76] : memref<128xi32, #tpu.memory_space<smem>>
      %78 = arith.index_cast %77 : i32 to index
      %c0_30 = arith.constant 0 : index
      %79 = vector.load %arg2[%78, %c0_30] : memref<32x34xf32, #tpu.memory_space<vmem>>, vector<1x34xf32>
      %80 = arith.addf %74, %79 : vector<1x34xf32>
      %c2_i32_31 = arith.constant 2 : i32
      %81 = arith.addi %70, %c2_i32_31 : i32
      %82 = arith.index_cast %81 : i32 to index
      %83 = memref.load %arg1[%82] : memref<128xi32, #tpu.memory_space<smem>>
      %84 = arith.index_cast %83 : i32 to index
      %c0_32 = arith.constant 0 : index
      %85 = vector.load %arg2[%84, %c0_32] : memref<32x34xf32, #tpu.memory_space<vmem>>, vector<1x34xf32>
      %86 = arith.addf %80, %85 : vector<1x34xf32>
      %c3_i32_33 = arith.constant 3 : i32
      %87 = arith.addi %70, %c3_i32_33 : i32
      %88 = arith.index_cast %87 : i32 to index
      %89 = memref.load %arg1[%88] : memref<128xi32, #tpu.memory_space<smem>>
      %90 = arith.index_cast %89 : i32 to index
      %c0_34 = arith.constant 0 : index
      %91 = vector.load %arg2[%90, %c0_34] : memref<32x34xf32, #tpu.memory_space<vmem>>, vector<1x34xf32>
      %92 = arith.addf %86, %91 : vector<1x34xf32>
      %93 = arith.addi %1, %17 : i32
      %c3_i32_35 = arith.constant 3 : i32
      %94 = arith.addi %93, %c3_i32_35 : i32
      %c4_i32_36 = arith.constant 4 : i32
      %95 = arith.muli %94, %c4_i32_36 : i32
      %96 = arith.index_cast %95 : i32 to index
      %97 = memref.load %arg1[%96] : memref<128xi32, #tpu.memory_space<smem>>
      %98 = arith.index_cast %97 : i32 to index
      %c0_37 = arith.constant 0 : index
      %99 = vector.load %arg2[%98, %c0_37] : memref<32x34xf32, #tpu.memory_space<vmem>>, vector<1x34xf32>
      %c1_i32_38 = arith.constant 1 : i32
      %100 = arith.addi %95, %c1_i32_38 : i32
      %101 = arith.index_cast %100 : i32 to index
      %102 = memref.load %arg1[%101] : memref<128xi32, #tpu.memory_space<smem>>
      %103 = arith.index_cast %102 : i32 to index
      %c0_39 = arith.constant 0 : index
      %104 = vector.load %arg2[%103, %c0_39] : memref<32x34xf32, #tpu.memory_space<vmem>>, vector<1x34xf32>
      %105 = arith.addf %99, %104 : vector<1x34xf32>
      %c2_i32_40 = arith.constant 2 : i32
      %106 = arith.addi %95, %c2_i32_40 : i32
      %107 = arith.index_cast %106 : i32 to index
      %108 = memref.load %arg1[%107] : memref<128xi32, #tpu.memory_space<smem>>
      %109 = arith.index_cast %108 : i32 to index
      %c0_41 = arith.constant 0 : index
      %110 = vector.load %arg2[%109, %c0_41] : memref<32x34xf32, #tpu.memory_space<vmem>>, vector<1x34xf32>
      %111 = arith.addf %105, %110 : vector<1x34xf32>
      %c3_i32_42 = arith.constant 3 : i32
      %112 = arith.addi %95, %c3_i32_42 : i32
      %113 = arith.index_cast %112 : i32 to index
      %114 = memref.load %arg1[%113] : memref<128xi32, #tpu.memory_space<smem>>
      %115 = arith.index_cast %114 : i32 to index
      %c0_43 = arith.constant 0 : index
      %116 = vector.load %arg2[%115, %c0_43] : memref<32x34xf32, #tpu.memory_space<vmem>>, vector<1x34xf32>
      %117 = arith.addf %111, %116 : vector<1x34xf32>
      %118 = arith.addi %1, %17 : i32
      %c4_i32_44 = arith.constant 4 : i32
      %119 = arith.addi %118, %c4_i32_44 : i32
      %c4_i32_45 = arith.constant 4 : i32
      %120 = arith.muli %119, %c4_i32_45 : i32
      %121 = arith.index_cast %120 : i32 to index
      %122 = memref.load %arg1[%121] : memref<128xi32, #tpu.memory_space<smem>>
      %123 = arith.index_cast %122 : i32 to index
      %c0_46 = arith.constant 0 : index
      %124 = vector.load %arg2[%123, %c0_46] : memref<32x34xf32, #tpu.memory_space<vmem>>, vector<1x34xf32>
      %c1_i32_47 = arith.constant 1 : i32
      %125 = arith.addi %120, %c1_i32_47 : i32
      %126 = arith.index_cast %125 : i32 to index
      %127 = memref.load %arg1[%126] : memref<128xi32, #tpu.memory_space<smem>>
      %128 = arith.index_cast %127 : i32 to index
      %c0_48 = arith.constant 0 : index
      %129 = vector.load %arg2[%128, %c0_48] : memref<32x34xf32, #tpu.memory_space<vmem>>, vector<1x34xf32>
      %130 = arith.addf %124, %129 : vector<1x34xf32>
      %c2_i32_49 = arith.constant 2 : i32
      %131 = arith.addi %120, %c2_i32_49 : i32
      %132 = arith.index_cast %131 : i32 to index
      %133 = memref.load %arg1[%132] : memref<128xi32, #tpu.memory_space<smem>>
      %134 = arith.index_cast %133 : i32 to index
      %c0_50 = arith.constant 0 : index
      %135 = vector.load %arg2[%134, %c0_50] : memref<32x34xf32, #tpu.memory_space<vmem>>, vector<1x34xf32>
      %136 = arith.addf %130, %135 : vector<1x34xf32>
      %c3_i32_51 = arith.constant 3 : i32
      %137 = arith.addi %120, %c3_i32_51 : i32
      %138 = arith.index_cast %137 : i32 to index
      %139 = memref.load %arg1[%138] : memref<128xi32, #tpu.memory_space<smem>>
      %140 = arith.index_cast %139 : i32 to index
      %c0_52 = arith.constant 0 : index
      %141 = vector.load %arg2[%140, %c0_52] : memref<32x34xf32, #tpu.memory_space<vmem>>, vector<1x34xf32>
      %142 = arith.addf %136, %141 : vector<1x34xf32>
      %143 = arith.addi %1, %17 : i32
      %c5_i32 = arith.constant 5 : i32
      %144 = arith.addi %143, %c5_i32 : i32
      %c4_i32_53 = arith.constant 4 : i32
      %145 = arith.muli %144, %c4_i32_53 : i32
      %146 = arith.index_cast %145 : i32 to index
      %147 = memref.load %arg1[%146] : memref<128xi32, #tpu.memory_space<smem>>
      %148 = arith.index_cast %147 : i32 to index
      %c0_54 = arith.constant 0 : index
      %149 = vector.load %arg2[%148, %c0_54] : memref<32x34xf32, #tpu.memory_space<vmem>>, vector<1x34xf32>
      %c1_i32_55 = arith.constant 1 : i32
      %150 = arith.addi %145, %c1_i32_55 : i32
      %151 = arith.index_cast %150 : i32 to index
      %152 = memref.load %arg1[%151] : memref<128xi32, #tpu.memory_space<smem>>
      %153 = arith.index_cast %152 : i32 to index
      %c0_56 = arith.constant 0 : index
      %154 = vector.load %arg2[%153, %c0_56] : memref<32x34xf32, #tpu.memory_space<vmem>>, vector<1x34xf32>
      %155 = arith.addf %149, %154 : vector<1x34xf32>
      %c2_i32_57 = arith.constant 2 : i32
      %156 = arith.addi %145, %c2_i32_57 : i32
      %157 = arith.index_cast %156 : i32 to index
      %158 = memref.load %arg1[%157] : memref<128xi32, #tpu.memory_space<smem>>
      %159 = arith.index_cast %158 : i32 to index
      %c0_58 = arith.constant 0 : index
      %160 = vector.load %arg2[%159, %c0_58] : memref<32x34xf32, #tpu.memory_space<vmem>>, vector<1x34xf32>
      %161 = arith.addf %155, %160 : vector<1x34xf32>
      %c3_i32_59 = arith.constant 3 : i32
      %162 = arith.addi %145, %c3_i32_59 : i32
      %163 = arith.index_cast %162 : i32 to index
      %164 = memref.load %arg1[%163] : memref<128xi32, #tpu.memory_space<smem>>
      %165 = arith.index_cast %164 : i32 to index
      %c0_60 = arith.constant 0 : index
      %166 = vector.load %arg2[%165, %c0_60] : memref<32x34xf32, #tpu.memory_space<vmem>>, vector<1x34xf32>
      %167 = arith.addf %161, %166 : vector<1x34xf32>
      %168 = arith.addi %1, %17 : i32
      %c6_i32 = arith.constant 6 : i32
      %169 = arith.addi %168, %c6_i32 : i32
      %c4_i32_61 = arith.constant 4 : i32
      %170 = arith.muli %169, %c4_i32_61 : i32
      %171 = arith.index_cast %170 : i32 to index
      %172 = memref.load %arg1[%171] : memref<128xi32, #tpu.memory_space<smem>>
      %173 = arith.index_cast %172 : i32 to index
      %c0_62 = arith.constant 0 : index
      %174 = vector.load %arg2[%173, %c0_62] : memref<32x34xf32, #tpu.memory_space<vmem>>, vector<1x34xf32>
      %c1_i32_63 = arith.constant 1 : i32
      %175 = arith.addi %170, %c1_i32_63 : i32
      %176 = arith.index_cast %175 : i32 to index
      %177 = memref.load %arg1[%176] : memref<128xi32, #tpu.memory_space<smem>>
      %178 = arith.index_cast %177 : i32 to index
      %c0_64 = arith.constant 0 : index
      %179 = vector.load %arg2[%178, %c0_64] : memref<32x34xf32, #tpu.memory_space<vmem>>, vector<1x34xf32>
      %180 = arith.addf %174, %179 : vector<1x34xf32>
      %c2_i32_65 = arith.constant 2 : i32
      %181 = arith.addi %170, %c2_i32_65 : i32
      %182 = arith.index_cast %181 : i32 to index
      %183 = memref.load %arg1[%182] : memref<128xi32, #tpu.memory_space<smem>>
      %184 = arith.index_cast %183 : i32 to index
      %c0_66 = arith.constant 0 : index
      %185 = vector.load %arg2[%184, %c0_66] : memref<32x34xf32, #tpu.memory_space<vmem>>, vector<1x34xf32>
      %186 = arith.addf %180, %185 : vector<1x34xf32>
      %c3_i32_67 = arith.constant 3 : i32
      %187 = arith.addi %170, %c3_i32_67 : i32
      %188 = arith.index_cast %187 : i32 to index
      %189 = memref.load %arg1[%188] : memref<128xi32, #tpu.memory_space<smem>>
      %190 = arith.index_cast %189 : i32 to index
      %c0_68 = arith.constant 0 : index
      %191 = vector.load %arg2[%190, %c0_68] : memref<32x34xf32, #tpu.memory_space<vmem>>, vector<1x34xf32>
      %192 = arith.addf %186, %191 : vector<1x34xf32>
      %193 = arith.addi %1, %17 : i32
      %c7_i32 = arith.constant 7 : i32
      %194 = arith.addi %193, %c7_i32 : i32
      %c4_i32_69 = arith.constant 4 : i32
      %195 = arith.muli %194, %c4_i32_69 : i32
      %196 = arith.index_cast %195 : i32 to index
      %197 = memref.load %arg1[%196] : memref<128xi32, #tpu.memory_space<smem>>
      %198 = arith.index_cast %197 : i32 to index
      %c0_70 = arith.constant 0 : index
      %199 = vector.load %arg2[%198, %c0_70] : memref<32x34xf32, #tpu.memory_space<vmem>>, vector<1x34xf32>
      %c1_i32_71 = arith.constant 1 : i32
      %200 = arith.addi %195, %c1_i32_71 : i32
      %201 = arith.index_cast %200 : i32 to index
      %202 = memref.load %arg1[%201] : memref<128xi32, #tpu.memory_space<smem>>
      %203 = arith.index_cast %202 : i32 to index
      %c0_72 = arith.constant 0 : index
      %204 = vector.load %arg2[%203, %c0_72] : memref<32x34xf32, #tpu.memory_space<vmem>>, vector<1x34xf32>
      %205 = arith.addf %199, %204 : vector<1x34xf32>
      %c2_i32_73 = arith.constant 2 : i32
      %206 = arith.addi %195, %c2_i32_73 : i32
      %207 = arith.index_cast %206 : i32 to index
      %208 = memref.load %arg1[%207] : memref<128xi32, #tpu.memory_space<smem>>
      %209 = arith.index_cast %208 : i32 to index
      %c0_74 = arith.constant 0 : index
      %210 = vector.load %arg2[%209, %c0_74] : memref<32x34xf32, #tpu.memory_space<vmem>>, vector<1x34xf32>
      %211 = arith.addf %205, %210 : vector<1x34xf32>
      %c3_i32_75 = arith.constant 3 : i32
      %212 = arith.addi %195, %c3_i32_75 : i32
      %213 = arith.index_cast %212 : i32 to index
      %214 = memref.load %arg1[%213] : memref<128xi32, #tpu.memory_space<smem>>
      %215 = arith.index_cast %214 : i32 to index
      %c0_76 = arith.constant 0 : index
      %216 = vector.load %arg2[%215, %c0_76] : memref<32x34xf32, #tpu.memory_space<vmem>>, vector<1x34xf32>
      %217 = arith.addf %211, %216 : vector<1x34xf32>
      %218 = tpu.concatenate %42, %67, %92, %117, %142, %167, %192, %217 in 0 : vector<1x34xf32>, vector<1x34xf32>, vector<1x34xf32>, vector<1x34xf32>, vector<1x34xf32>, vector<1x34xf32>, vector<1x34xf32>, vector<1x34xf32> -> vector<8x34xf32>
      %219 = arith.index_cast %17 : i32 to index
      %c0_77 = arith.constant 0 : index
      %220 = vector.load %arg6[%219, %c0_77] : memref<16x34xf32, #tpu.memory_space<vmem>>, vector<8x34xf32>
      tpu.vector_store %arg6[%219, %c0_77], %218 {strides = array<i32>} : memref<16x34xf32, #tpu.memory_space<vmem>>, vector<8x34xf32>,
    }
    %c2_i32_0 = arith.constant 2 : i32
    %3 = arith.index_cast %1 : i32 to index
    %c0 = arith.constant 0 : index
    %4 = vector.load %arg2[%3, %c0] : memref<32x34xf32, #tpu.memory_space<vmem>>, vector<16x34xf32>
    %c0_1 = arith.constant 0 : index
    %c0_2 = arith.constant 0 : index
    %5 = vector.load %arg6[%c0_1, %c0_2] : memref<16x34xf32, #tpu.memory_space<vmem>>, vector<16x34xf32>
    %6 = tpu.concatenate %4, %5 in 1 : vector<16x34xf32>, vector<16x34xf32> -> vector<16x68xf32>
    %7 = arith.truncf %6 : vector<16x68xf32> to vector<16x68xbf16>
    %c0_3 = arith.constant 0 : index
    %c0_4 = arith.constant 0 : index
    %8 = vector.load %arg3[%c0_3, %c0_4] : memref<68x128xbf16, #tpu.memory_space<vmem>>, vector<68x128xbf16>
    %cst = arith.constant dense<0.000000e+00> : vector<16x128xf32>
    %9 = tpu.matmul %7, %8, %cst {dimension_numbers = #tpu.dot_dimension_numbers<[1], [0], [0], [1], [0, 0, 1, 1], [], []>} : vector<16x68xbf16>, vector<68x128xbf16>, vector<16x128xf32> -> vector<16x128xf32>
    %c0_5 = arith.constant 0 : index
    %c0_6 = arith.constant 0 : index
    %10 = vector.load %arg4[%c0_5, %c0_6] : memref<1x128xf32, #tpu.memory_space<vmem>>, vector<1x128xf32>
    %11 = vector.broadcast %10 : vector<1x128xf32> to vector<16x128xf32>
    %12 = arith.addf %9, %11 : vector<16x128xf32>
    %cst_7 = arith.constant 0.000000e+00 : f32
    %13 = vector.broadcast %cst_7 : f32 to vector<16x128xf32>
    %14 = arith.maximumf %12, %13 : vector<16x128xf32>
    %c0_8 = arith.constant 0 : index
    %c0_9 = arith.constant 0 : index
    %15 = vector.load %arg5[%c0_8, %c0_9] : memref<16x128xf32, #tpu.memory_space<vmem>>, vector<16x128xf32>
    tpu.vector_store %arg5[%c0_8, %c0_9], %14 {strides = array<i32>} : memref<16x128xf32, #tpu.memory_space<vmem>>, vector<16x128xf32>,
    return
  }
  func.func @transform_0(%arg0: i32, %arg1: memref<128xi32, #tpu.memory_space<smem>>) -> (i32, i32) {
    %c0_i32 = arith.constant 0 : i32
    %c0_i32_0 = arith.constant 0 : i32
    %c0_i32_1 = arith.constant 0 : i32
    return %c0_i32, %c0_i32_0 : i32, i32
  }
  func.func @transform_1(%arg0: i32, %arg1: memref<128xi32, #tpu.memory_space<smem>>) -> (i32, i32) {
    %c0_i32 = arith.constant 0 : i32
    %c0_i32_0 = arith.constant 0 : i32
    %c0_i32_1 = arith.constant 0 : i32
    return %c0_i32, %c0_i32_0 : i32, i32
  }
  func.func @transform_2(%arg0: i32, %arg1: memref<128xi32, #tpu.memory_space<smem>>) -> (i32, i32) {
    %c0_i32 = arith.constant 0 : i32
    %c0_i32_0 = arith.constant 0 : i32
    %c0_i32_1 = arith.constant 0 : i32
    return %c0_i32, %c0_i32_0 : i32, i32
  }
  func.func @transform_3(%arg0: i32, %arg1: memref<128xi32, #tpu.memory_space<smem>>) -> (i32, i32) {
    %c0_i32 = arith.constant 0 : i32
    %c0_i32_0 = arith.constant 0 : i32
    return %arg0, %c0_i32 : i32, i32
  }
}

</mosaic_0001>

<llo_original>
// kernel: tpu_custom_call.1
$region0: #{tpu_custom_call.1}
  #allocation0 [shape = 'u32[]', space=smem, size = 0x4, offset = 0x4, fixed_abs, tag = 'smem constant byte address 0x4 - core index']
  #allocation1 [shape = 'u32[144,128]{1,0:T(1,128)}', space=vmem, size = 0x12000, scoped, tag = 'internal scratch']
  #allocation2 [shape = 'f32[16,34]{1,0:T(8,128)}', space=vmem, size = 0x2000, scoped, tag = 'scratch operand']
  #allocation3 [shape = 's32[1]{0}', space=sflag, size = 0x4, scoped, tag = 'scoped memory for tpu_custom_call.1']
  #allocation4 [shape = 'u8[512]{0}', space=smem, size = 0x200, scoped, tag = 'prefetched SMEM operand 0']
  %s0 = inlined_call_operand.hbm [shape: s32[128], index: 0, kind: input, shape index: {}]
  %s1 = inlined_call_operand.hbm [shape: f32[32,34], index: 1, kind: input, shape index: {}]
  %s2 = inlined_call_operand.hbm [shape: bf16[68,128], index: 2, kind: input, shape index: {}]
  %s3 = inlined_call_operand.vmem [shape: f32[1,128], index: 3, kind: input, shape index: {}]
  %s4 = inlined_call_operand.hbm [shape: f32[32,128], index: 4, kind: output, shape index: {}]
  %s5 = sld [smem:[#allocation0]]
  $region60: #{tpu_custom_call.1} parent=0
    _
  %s7 = ssub.s32 1, %s5
  %s8 = scalar_select 0, %s7, %s5
  %10 = dma.hbm_to_smem %s0, 16, [#allocation4], [#allocation3]
  %11 = dma.done [#allocation3], 16
  %12 = sfence
  $region1: #{tpu_custom_call.1} parent=0
    #allocation5 [shape = 'u8[16384]{0}', space=vmem, size = 0x4000, scoped, tag = 'input window, operand 1, single buffered']
    #allocation6 [shape = 's32[2]{0}', space=sflag, size = 0x8, scoped, tag = 'scoped memory for tpu_custom_call.1']
    #allocation7 [shape = 's32[2]{0}', space=sflag, size = 0x8, scoped, tag = 'scoped memory for tpu_custom_call.1']
    #allocation8 [shape = 'u8[18432]{0}', space=vmem, size = 0x4800, scoped, tag = 'input window, operand 2, single buffered']
    #allocation9 [shape = 's32[1]{0}', space=sflag, size = 0x4, scoped, tag = 'scoped memory for tpu_custom_call.1']
    #allocation10 [shape = 'u8[16384]{0}', space=vmem, size = 0x4000, scoped, tag = 'output window, operand 0']
    %13 = vsyncpa [#allocation6], 0
    %14 = vsyncpa [#allocation9], 0
    %15 = vsyncpa [#allocation7], 0
    %s16 = scalar_lea.sflag [#allocation7], 1
    %17 = vsyncpa %s16, 0
    loop: start=0, step=1, limit=4
    $region2: #{tpu_custom_call.1} parent=1 // loop_pre_header
      _
    $region3: #{tpu_custom_call.1} parent=1 // loop_header
      %s19 = sphi 0, %s23
      %p20 = scmp.ge.s32.totalorder %s19, 4
      %s27 = sphi 0, %s27
      %s29 = sphi 0, %s27
      %s30 = sphi 0, %s29
      %s44 = sphi 0, %s30
      %s48 = sphi 0, %s48
      %s50 = sphi 0, %s48
      %s51 = sphi 0, %s50
      %s65 = sphi 0, %s51
      %s69 = sphi 0, %s69
      %s71 = sphi 0, %s69
      %s72 = sphi 0, %s71
      %s86 = sphi 0, %s72
      %s92 = sphi 0, %s94
      %s95 = sphi 0, %s92
      %s96 = sphi 0, %s95
      %s112 = sphi 0, %s96
    $region4: #{tpu_custom_call.1} parent=1 // loop_header_branch
      %22 = sbr.rel (%p20) target = $region8
    $region5: #{tpu_custom_call.1} parent=1 // loop_body
      %s24 = ssub.s32 %s19, 1
      %s25 = ssub.s32 %s19, 2
      %s26 = sadd.s32 %s19, 1
      %s28 = sadd.s32 %s27, 1
      %p31 = scmp.eq.s32.totalorder %s19, 1
      %p32 = scmp.ne.s32.totalorder %s27, %s29
      %p33 = scmp.eq.s32.totalorder %s19, 0
      %p34 = por %p32, %p33
      %p35 = scmp.ne.s32.totalorder %s27, %s29
      %p36 = scmp.eq.s32.totalorder %s24, 1
      %p37 = por %p35, %p36
      %p38 = scmp.ne.s32.totalorder %s29, %s30
      %p39 = scmp.eq.s32.totalorder %s24, 0
      %p40 = por %p38, %p39
      %p41 = scmp.ne.s32.totalorder %s29, %s30
      %p42 = scmp.eq.s32.totalorder %s25, 1
      %p43 = por %p41, %p42
      %p45 = scmp.ne.s32.totalorder %s30, %s44
      %p46 = scmp.eq.s32.totalorder %s25, 0
      %p47 = por %p45, %p46
      %s49 = sadd.s32 %s48, 1
      %p52 = scmp.eq.s32.totalorder %s19, 1
      %p53 = scmp.ne.s32.totalorder %s48, %s50
      %p54 = scmp.eq.s32.totalorder %s19, 0
      %p55 = por %p53, %p54
      %p56 = scmp.ne.s32.totalorder %s48, %s50
      %p57 = scmp.eq.s32.totalorder %s24, 1
      %p58 = por %p56, %p57
      %p59 = scmp.ne.s32.totalorder %s50, %s51
      %p60 = scmp.eq.s32.totalorder %s24, 0
      %p61 = por %p59, %p60
      %p62 = scmp.ne.s32.totalorder %s50, %s51
      %p63 = scmp.eq.s32.totalorder %s25, 1
      %p64 = por %p62, %p63
      %p66 = scmp.ne.s32.totalorder %s51, %s65
      %p67 = scmp.eq.s32.totalorder %s25, 0
      %p68 = por %p66, %p67
      %s70 = sadd.s32 %s69, 1
      %p73 = scmp.eq.s32.totalorder %s19, 1
      %p74 = scmp.ne.s32.totalorder %s69, %s71
      %p75 = scmp.eq.s32.totalorder %s19, 0
      %p76 = por %p74, %p75
      %p77 = scmp.ne.s32.totalorder %s69, %s71
      %p78 = scmp.eq.s32.totalorder %s24, 1
      %p79 = por %p77, %p78
      %p80 = scmp.ne.s32.totalorder %s71, %s72
      %p81 = scmp.eq.s32.totalorder %s24, 0
      %p82 = por %p80, %p81
      %p83 = scmp.ne.s32.totalorder %s71, %s72
      %p84 = scmp.eq.s32.totalorder %s25, 1
      %p85 = por %p83, %p84
      %p87 = scmp.ne.s32.totalorder %s72, %s86
      %p88 = scmp.eq.s32.totalorder %s25, 0
      %p89 = por %p87, %p88
      %s90 = ssub.s32 %s19, %s26
      %p91 = scmp.eq.s32.totalorder %s90, 0
      %s93 = sadd.s32 %s92, 1
      %s94 = scalar_select %p91, %s92, %s93
      %p97 = pneg %p91
      %p98 = scmp.eq.s32.totalorder %s19, 1
      %p99 = por %p97, %p98
      %p100 = scmp.ne.s32.totalorder %s92, %s95
      %p101 = scmp.eq.s32.totalorder %s19, 0
      %p102 = por %p100, %p101
      %p103 = scmp.ne.s32.totalorder %s92, %s95
      %p104 = scmp.eq.s32.totalorder %s24, 1
      %p105 = por %p103, %p104
      %p106 = scmp.ne.s32.totalorder %s95, %s96
      %p107 = scmp.eq.s32.totalorder %s24, 0
      %p108 = por %p106, %p107
      %p109 = scmp.ne.s32.totalorder %s95, %s96
      %p110 = scmp.eq.s32.totalorder %s25, 1
      %p111 = por %p109, %p110
      %p113 = scmp.ne.s32.totalorder %s96, %s112
      %p114 = scmp.eq.s32.totalorder %s25, 0
      %p115 = por %p113, %p114
      %p116 = scmp.le.s32.totalorder 1, %s19
      %p117 = scmp.lt.s32.totalorder %s19, 3
      %p118 = pnand %p116, %p117
      %p119 = pneg %p118
      // Predicated region
      $region9: #{tpu_custom_call.1} parent=5 // pred_check
        _
      $region10: #{tpu_custom_call.1} parent=5 // pred_check_branch
        %121 = sbr.rel (%p118) target = $region12
      $region11: #{tpu_custom_call.1} parent=5 // pred_region
        %s122 = ssub.s32 %s19, 1
        // Predicated region
        $region13: #{tpu_custom_call.1} parent=11 // pred_check
          %p123 = pneg %p40
        $region14: #{tpu_custom_call.1} parent=11 // pred_check_branch
          %125 = sbr.rel (%p123) target = $region16
        $region15: #{tpu_custom_call.1} parent=11 // pred_region
          %s127 = ssub.s32 512, 512
          %128 = vsyncadd [#allocation6], %s127
          %s129 = sshll.u32 [#allocation5], 4
          %s130 = int_to_ptr.vmem [resolvable:$true] %s129
          %135 = dma.hbm_to_vmem [thread:$0]  %s1, 512, %s130, [#allocation6], 128, 128, 8
        $region16: #{tpu_custom_call.1} parent=11 // pred_fallthru
          _
        // Predicated region
        $region17: #{tpu_custom_call.1} parent=11 // pred_check
          %p136 = pneg %p61
        $region18: #{tpu_custom_call.1} parent=11 // pred_check_branch
          %138 = sbr.rel (%p136) target = $region20
        $region19: #{tpu_custom_call.1} parent=11 // pred_region
          %s140 = ssub.s32 576, 576
          %141 = vsyncadd [#allocation9], %s140
          %s142 = sshll.u32 [#allocation8], 4
          %s143 = int_to_ptr.vmem [resolvable:$true] %s142
          %148 = dma.hbm_to_vmem [thread:$0]  %s2, 576, %s143, [#allocation9], 64, 64, 4
        $region20: #{tpu_custom_call.1} parent=11 // pred_fallthru
          _
        // Predicated region
        $region21: #{tpu_custom_call.1} parent=11 // pred_check
          %p149 = pneg %p82
        $region22: #{tpu_custom_call.1} parent=11 // pred_check_branch
          %151 = sbr.rel (%p149) target = $region24
        $region23: #{tpu_custom_call.1} parent=11 // pred_region
          _
        $region24: #{tpu_custom_call.1} parent=11 // pred_fallthru
          _
      $region12: #{tpu_custom_call.1} parent=5 // pred_fallthru
        _
      %p152 = scmp.lt.s32.totalorder %s19, 2
      // Predicated region
      $region25: #{tpu_custom_call.1} parent=5 // pred_check
        %p153 = pneg %p152
      $region26: #{tpu_custom_call.1} parent=5 // pred_check_branch
        %155 = sbr.rel (%p153) target = $region28
      $region27: #{tpu_custom_call.1} parent=5 // pred_region
        _
      $region28: #{tpu_custom_call.1} parent=5 // pred_fallthru
        _
      %p156 = scmp.le.s32.totalorder 1, %s19
      %p157 = scmp.lt.s32.totalorder %s19, 3
      %p158 = pnand %p156, %p157
      %p159 = pneg %p158
      // Predicated region
      $region29: #{tpu_custom_call.1} parent=5 // pred_check
        _
      $region30: #{tpu_custom_call.1} parent=5 // pred_check_branch
        %161 = sbr.rel (%p158) target = $region32
      $region31: #{tpu_custom_call.1} parent=5 // pred_region
        %s162 = ssub.s32 %s19, 1
        // Predicated region
        $region33: #{tpu_custom_call.1} parent=31 // pred_check
          %p163 = pneg %p40
        $region34: #{tpu_custom_call.1} parent=31 // pred_check_branch
          %165 = sbr.rel (%p163) target = $region36
        $region35: #{tpu_custom_call.1} parent=31 // pred_region
          %166 = dma.done [#allocation6], 512
        $region36: #{tpu_custom_call.1} parent=31 // pred_fallthru
          _
        // Predicated region
        $region37: #{tpu_custom_call.1} parent=31 // pred_check
          %p167 = pneg %p61
        $region38: #{tpu_custom_call.1} parent=31 // pred_check_branch
          %169 = sbr.rel (%p167) target = $region40
        $region39: #{tpu_custom_call.1} parent=31 // pred_region
          %170 = dma.done [#allocation9], 576
        $region40: #{tpu_custom_call.1} parent=31 // pred_fallthru
          _
        %p171 = pneg %p40
        %p172 = pneg %p37
        %p173 = pneg %p61
        %p174 = pneg %p58
        %p175 = pneg %p82
        %p176 = pneg %p79
        %p177 = pneg %p108
        %p178 = pneg %p105
        %s179 = sand.u32 %s95, 1
        %s180 = scalar_lea.sflag [#allocation7], %s179
        %s181 = sand.u32 %s95, 1
        %s182 = smul.addr %s181, 16
        %s183 = scalar_lea.vmem [#allocation10], %s182
        %s184 = smul.u32 2, %s24
        %s186 = smul.u32 %s24, 16
        loop: start=0, step=1, limit=2
        $region41: #{tpu_custom_call.1} parent=31 // loop_pre_header
          _
        $region42: #{tpu_custom_call.1} parent=31 // loop_header
          %s188 = sphi 0, %s192
          %p189 = scmp.ge.s32.totalorder %s188, 2
        $region43: #{tpu_custom_call.1} parent=31 // loop_header_branch
          %191 = sbr.rel (%p189) target = $region47
        $region44: #{tpu_custom_call.1} parent=31 // loop_body
          %s193 = smul.u32 %s188, 8
          %s194 = sadd.s32 %s186, %s193
          %s195 = smul.u32 %s194, 4
          %s196 = sld [smem:[#allocation4 + %s195]]
          %s197 = scalar_lea.vmem [#allocation5], %s196
          %v198 = vld [vmem:[%s197] sm:$0x1]
          %s199 = sadd.s32 %s195, 1
          %s200 = sld [smem:[#allocation4 + %s199]]
          %s201 = scalar_lea.vmem [#allocation5], %s200
          %v202 = vld [vmem:[%s201] sm:$0x1]
          %v203 = vadd.f32 %v198, %v202
          %s204 = sadd.s32 %s195, 2
          %s205 = sld [smem:[#allocation4 + %s204]]
          %s206 = scalar_lea.vmem [#allocation5], %s205
          %v207 = vld [vmem:[%s206] sm:$0x1]
          %v208 = vadd.f32 %v203, %v207
          %s209 = sadd.s32 %s195, 3
          %s210 = sld [smem:[#allocation4 + %s209]]
          %s211 = scalar_lea.vmem [#allocation5], %s210
          %v212 = vld [vmem:[%s211] sm:$0x1]
          %v213 = vadd.f32 %v208, %v212
          %s214 = sadd.s32 %s194, 1
          %s215 = smul.u32 %s214, 4
          %s216 = sld [smem:[#allocation4 + %s215]]
          %s217 = scalar_lea.vmem [#allocation5], %s216
          %v218 = vld [vmem:[%s217] sm:$0x1]
          %s219 = sadd.s32 %s215, 1
          %s220 = sld [smem:[#allocation4 + %s219]]
          %s221 = scalar_lea.vmem [#allocation5], %s220
          %v222 = vld [vmem:[%s221] sm:$0x1]
          %v223 = vadd.f32 %v218, %v222
          %s224 = sadd.s32 %s215, 2
          %s225 = sld [smem:[#allocation4 + %s224]]
          %s226 = scalar_lea.vmem [#allocation5], %s225
          %v227 = vld [vmem:[%s226] sm:$0x1]
          %v228 = vadd.f32 %v223, %v227
          %s229 = sadd.s32 %s215, 3
          %s230 = sld [smem:[#allocation4 + %s229]]
          %s231 = scalar_lea.vmem [#allocation5], %s230
          %v232 = vld [vmem:[%s231] sm:$0x1]
          %v233 = vadd.f32 %v228, %v232
          %s234 = sadd.s32 %s194, 2
          %s235 = smul.u32 %s234, 4
          %s236 = sld [smem:[#allocation4 + %s235]]
          %s237 = scalar_lea.vmem [#allocation5], %s236
          %v238 = vld [vmem:[%s237] sm:$0x1]
          %s239 = sadd.s32 %s235, 1
          %s240 = sld [smem:[#allocation4 + %s239]]
          %s241 = scalar_lea.vmem [#allocation5], %s240
          %v242 = vld [vmem:[%s241] sm:$0x1]
          %v243 = vadd.f32 %v238, %v242
          %s244 = sadd.s32 %s235, 2
          %s245 = sld [smem:[#allocation4 + %s244]]
          %s246 = scalar_lea.vmem [#allocation5], %s245
          %v247 = vld [vmem:[%s246] sm:$0x1]
          %v248 = vadd.f32 %v243, %v247
          %s249 = sadd.s32 %s235, 3
          %s250 = sld [smem:[#allocation4 + %s249]]
          %s251 = scalar_lea.vmem [#allocation5], %s250
          %v252 = vld [vmem:[%s251] sm:$0x1]
          %v253 = vadd.f32 %v248, %v252
          %s254 = sadd.s32 %s194, 3
          %s255 = smul.u32 %s254, 4
          %s256 = sld [smem:[#allocation4 + %s255]]
          %s257 = scalar_lea.vmem [#allocation5], %s256
          %v258 = vld [vmem:[%s257] sm:$0x1]
          %s259 = sadd.s32 %s255, 1
          %s260 = sld [smem:[#allocation4 + %s259]]
          %s261 = scalar_lea.vmem [#allocation5], %s260
          %v262 = vld [vmem:[%s261] sm:$0x1]
          %v263 = vadd.f32 %v258, %v262
          %s264 = sadd.s32 %s255, 2
          %s265 = sld [smem:[#allocation4 + %s264]]
          %s266 = scalar_lea.vmem [#allocation5], %s265
          %v267 = vld [vmem:[%s266] sm:$0x1]
          %v268 = vadd.f32 %v263, %v267
          %s269 = sadd.s32 %s255, 3
          %s270 = sld [smem:[#allocation4 + %s269]]
          %s271 = scalar_lea.vmem [#allocation5], %s270
          %v272 = vld [vmem:[%s271] sm:$0x1]
          %v273 = vadd.f32 %v268, %v272
          %s274 = sadd.s32 %s194, 4
          %s275 = smul.u32 %s274, 4
          %s276 = sld [smem:[#allocation4 + %s275]]
          %s277 = scalar_lea.vmem [#allocation5], %s276
          %v278 = vld [vmem:[%s277] sm:$0x1]
          %s279 = sadd.s32 %s275, 1
          %s280 = sld [smem:[#allocation4 + %s279]]
          %s281 = scalar_lea.vmem [#allocation5], %s280
          %v282 = vld [vmem:[%s281] sm:$0x1]
          %v283 = vadd.f32 %v278, %v282
          %s284 = sadd.s32 %s275, 2
          %s285 = sld [smem:[#allocation4 + %s284]]
          %s286 = scalar_lea.vmem [#allocation5], %s285
          %v287 = vld [vmem:[%s286] sm:$0x1]
          %v288 = vadd.f32 %v283, %v287
          %s289 = sadd.s32 %s275, 3
          %s290 = sld [smem:[#allocation4 + %s289]]
          %s291 = scalar_lea.vmem [#allocation5], %s290
          %v292 = vld [vmem:[%s291] sm:$0x1]
          %v293 = vadd.f32 %v288, %v292
          %s294 = sadd.s32 %s194, 5
          %s295 = smul.u32 %s294, 4
          %s296 = sld [smem:[#allocation4 + %s295]]
          %s297 = scalar_lea.vmem [#allocation5], %s296
          %v298 = vld [vmem:[%s297] sm:$0x1]
          %s299 = sadd.s32 %s295, 1
          %s300 = sld [smem:[#allocation4 + %s299]]
          %s301 = scalar_lea.vmem [#allocation5], %s300
          %v302 = vld [vmem:[%s301] sm:$0x1]
          %v303 = vadd.f32 %v298, %v302
          %s304 = sadd.s32 %s295, 2
          %s305 = sld [smem:[#allocation4 + %s304]]
          %s306 = scalar_lea.vmem [#allocation5], %s305
          %v307 = vld [vmem:[%s306] sm:$0x1]
          %v308 = vadd.f32 %v303, %v307
          %s309 = sadd.s32 %s295, 3
          %s310 = sld [smem:[#allocation4 + %s309]]
          %s311 = scalar_lea.vmem [#allocation5], %s310
          %v312 = vld [vmem:[%s311] sm:$0x1]
          %v313 = vadd.f32 %v308, %v312
          %s314 = sadd.s32 %s194, 6
          %s315 = smul.u32 %s314, 4
          %s316 = sld [smem:[#allocation4 + %s315]]
          %s317 = scalar_lea.vmem [#allocation5], %s316
          %v318 = vld [vmem:[%s317] sm:$0x1]
          %s319 = sadd.s32 %s315, 1
          %s320 = sld [smem:[#allocation4 + %s319]]
          %s321 = scalar_lea.vmem [#allocation5], %s320
          %v322 = vld [vmem:[%s321] sm:$0x1]
          %v323 = vadd.f32 %v318, %v322
          %s324 = sadd.s32 %s315, 2
          %s325 = sld [smem:[#allocation4 + %s324]]
          %s326 = scalar_lea.vmem [#allocation5], %s325
          %v327 = vld [vmem:[%s326] sm:$0x1]
          %v328 = vadd.f32 %v323, %v327
          %s329 = sadd.s32 %s315, 3
          %s330 = sld [smem:[#allocation4 + %s329]]
          %s331 = scalar_lea.vmem [#allocation5], %s330
          %v332 = vld [vmem:[%s331] sm:$0x1]
          %v333 = vadd.f32 %v328, %v332
          %s334 = sadd.s32 %s194, 7
          %s335 = smul.u32 %s334, 4
          %s336 = sld [smem:[#allocation4 + %s335]]
          %s337 = scalar_lea.vmem [#allocation5], %s336
          %v338 = vld [vmem:[%s337] sm:$0x1]
          %s339 = sadd.s32 %s335, 1
          %s340 = sld [smem:[#allocation4 + %s339]]
          %s341 = scalar_lea.vmem [#allocation5], %s340
          %v342 = vld [vmem:[%s341] sm:$0x1]
          %v343 = vadd.f32 %v338, %v342
          %s344 = sadd.s32 %s335, 2
          %s345 = sld [smem:[#allocation4 + %s344]]
          %s346 = scalar_lea.vmem [#allocation5], %s345
          %v347 = vld [vmem:[%s346] sm:$0x1]
          %v348 = vadd.f32 %v343, %v347
          %s349 = sadd.s32 %s335, 3
          %s350 = sld [smem:[#allocation4 + %s349]]
          %s351 = scalar_lea.vmem [#allocation5], %s350
          %v352 = vld [vmem:[%s351] sm:$0x1]
          %v353 = vadd.f32 %v348, %v352
          %v355 = vrot.slane %v233, 7
          %v358 = vrot.slane %v253, 6
          %v361 = vrot.slane %v273, 5
          %v364 = vrot.slane %v293, 4
          %v367 = vrot.slane %v313, 3
          %v370 = vrot.slane %v333, 2
          %v373 = vrot.slane %v353, 1
          %vm375 = vcmask 1040384
          %v376 = vsel %vm375, %v213, %v355
          %vm377 = vcmask 1041408
          %v378 = vsel %vm377, %v376, %v358
          %vm379 = vcmask 1042432
          %v380 = vsel %vm379, %v378, %v361
          %vm381 = vcmask 1043456
          %v382 = vsel %vm381, %v380, %v364
          %vm383 = vcmask 1044480
          %v384 = vsel %vm383, %v382, %v367
          %vm385 = vcmask 1045504
          %v386 = vsel %vm385, %v384, %v370
          %vm387 = vcmask 1046528
          %v388 = vsel %vm387, %v386, %v373
          %s389 = scalar_lea.vmem [#allocation2], %s193
          %vm390 = vcmask 277504
          %391 = vst.msk [vmem:[%s389] sm:$0xff] %vm390, %v388
        $region45: #{tpu_custom_call.1} parent=31 // loop_footer
          %s192 = sadd.s32 1, %s188
        $region46: #{tpu_custom_call.1} parent=31 // loop_footer_branch
          %187 = sbr.rel target = $region42
        $region47: #{tpu_custom_call.1} parent=31 // loop_exit
          _
        %s392 = scalar_lea.vmem [#allocation5], %s186
        %v393 = vld [vmem:[%s392] sm:$0xff]
        %v394 = vld [vmem:[%s392 + $0x8] sm:$0xff]
        %v395 = vld [vmem:[#allocation2] sm:$0xff]
        %v396 = vld [vmem:[#allocation2 + $0x8] sm:$0xff]
        %399 = vrot.lane.b32.xlu0 %v395, 34
        %v400 = vpop.permute.xlu0 %399
        %401 = vrot.lane.b32.xlu0 %v396, 34
        %v402 = vpop.permute.xlu0 %401
        %vm405 = vcmask 277504
        %v406 = vsel %vm405, %v393, %v400
        %v407 = vsel %vm405, %v394, %v402
        %v408 = vpack.c.bf16 %v407, %v406
        %v409 = vld [vmem:[#allocation8] sm:$0xf]
        %v410 = vld [vmem:[#allocation8 + $0x4] sm:$0xf]
        %v411 = vld [vmem:[#allocation8 + $0x8] sm:$0xf]
        %v412 = vld [vmem:[#allocation8 + $0xc] sm:$0xf]
        %v413 = vld [vmem:[#allocation8 + $0x10] sm:$0xf]
        %v414 = vld [vmem:[#allocation8 + $0x14] sm:$0xf]
        %v415 = vld [vmem:[#allocation8 + $0x18] sm:$0xf]
        %v416 = vld [vmem:[#allocation8 + $0x1c] sm:$0xf]
        %v417 = vld [vmem:[#allocation8 + $0x20] sm:$0x3]
        %v418 = vld [vmem:[%s3] sm:$0x1]
        %v420 = vlaneseq
        %v421 = vshrl.u32 %v420, 7
        %v422 = vsub.s32 0, %v421
        %v423 = vrot.slane %v418, %v422
        %v434 = vunpack.c.l.b16 %v409
        %v435 = vunpack.c.l.b16 %v410
        %v436 = vunpack.c.l.b16 %v411
        %v437 = vunpack.c.l.b16 %v412
        %v438 = vunpack.c.l.b16 %v413
        %v439 = vunpack.c.l.b16 %v414
        %v440 = vunpack.c.l.b16 %v415
        %v441 = vunpack.c.l.b16 %v416
        %v442 = vunpack.c.l.b16 %v417
        %v443 = vpack.c.b16 %v435, %v434
        %v444 = vpack.c.b16 %v437, %v436
        %v445 = vpack.c.b16 %v439, %v438
        %v446 = vpack.c.b16 %v441, %v440
        %v447 = vpack.c.b16 %v442, %v442
        %vm452 = vcmask 556032
        %v454 = vsel %vm452, %v408, 0
        %vm456 = vcmask 1041408
        %v458 = vsel %vm456, %v447, 0
        %460 = vmatprep.subr.bf16.mxu0 0
        %461 = vmatpush1.bf16.msra.mxu0 %v443
        %462 = vmatprep.subr.bf16.mxu0 0
        %463 = vmatpush1.bf16.msra.mxu0 %v444
        %464 = vmatprep.subr.bf16.mxu0 0
        %465 = vmatpush1.bf16.msra.mxu0 %v445
        %466 = vmatprep.subr.bf16.mxu0 0
        %467 = vmatpush1.bf16.msra.mxu0 %v446
        %468 = vmatprep.subr.bf16.mxu0 0
        %469 = vmatpush1.bf16.msra.mxu0 %v458
        %470 = vmatprep.subr.bf16.mxu0 0
        %471 = vmatpush1.bf16.msra.mxu0 0
        %472 = vmatprep.subr.bf16.mxu0 0
        %473 = vmatpush1.bf16.msra.mxu0 0
        %474 = vmatprep.subr.bf16.mxu0 0
        %475 = vmatpush1.bf16.msra.mxu0 0
        %476 = vmatprep.subr.bf16.mxu0 0
        %477 = vmatpush1.bf16.msra.mxu0 0
        %478 = vmatprep.subr.bf16.mxu0 0
        %479 = vmatpush1.bf16.msra.mxu0 0
        %480 = vmatprep.subr.bf16.mxu0 0
        %481 = vmatpush1.bf16.msra.mxu0 0
        %482 = vmatprep.subr.bf16.mxu0 0
        %483 = vmatpush1.bf16.msra.mxu0 0
        %484 = vmatprep.subr.bf16.mxu0 0
        %485 = vmatpush1.bf16.msra.mxu0 0
        %486 = vmatprep.subr.bf16.mxu0 0
        %487 = vmatpush1.bf16.msra.mxu0 0
        %488 = vmatprep.subr.bf16.mxu0 0
        %489 = vmatpush1.bf16.msra.mxu0 0
        %490 = vmatprep.subr.bf16.mxu0 0
        %491 = vmatpush1.bf16.msra.mxu0 0
        %492 = vmatprep.mubr.bf16.mxu0 0
        %493 = vmatmul.mubr.bf16.gmra.mrb[0].mxu0 %v454
        %v494 = vpop.f32.mrb[0].mxu0
        %v495 = vadd.f32 %v423, %v494
        %v496 = vpop.f32.mrb[0].mxu0
        %v497 = vpop.f32.mrb[0].mxu0
        %v498 = vadd.f32 %v423, %v497
        %v499 = vpop.f32.mrb[0].mxu0
        %500 = vdwg.mxu0
        %v501 = vmax.f32 %v495, 0.0
        %v502 = vmax.f32 %v498, 0.0
        %503 = vst [vmem:[%s183] sm:$0xff] %v501
        %504 = vst [vmem:[%s183 + $0x8] sm:$0xff] %v502
        %s505 = sand.u32 %s95, 1
        %s506 = scalar_lea.sflag [#allocation7], %s505
        %s507 = sand.u32 %s95, 1
        %s508 = smul.addr %s507, 16
        %s509 = scalar_lea.vmem [#allocation10], %s508
        // Predicated region
        $region48: #{tpu_custom_call.1} parent=31 // pred_check
          %p510 = pneg %p105
        $region49: #{tpu_custom_call.1} parent=31 // pred_check_branch
          %512 = sbr.rel (%p510) target = $region51
        $region50: #{tpu_custom_call.1} parent=31 // pred_region
          %s513 = smul.u32 2, %s24
          %s515 = ssub.s32 256, 256
          %516 = vsyncadd %s506, %s515
          %s517 = smul.addr %s513, 128
          %s518 = scalar_lea.hbm %s4, %s517
          %s519 = sshll.u32 %s509, 4
          %s520 = int_to_ptr.vmem [resolvable:$true] %s519
          %525 = dma.vmem_to_hbm [thread:$0]  %s520, 256, %s518, %s506, 128, 128, 8
        $region51: #{tpu_custom_call.1} parent=31 // pred_fallthru
          _
      $region32: #{tpu_custom_call.1} parent=5 // pred_fallthru
        _
      %p526 = scmp.le.s32.totalorder 2, %s19
      // Predicated region
      $region52: #{tpu_custom_call.1} parent=5 // pred_check
        %p527 = pneg %p526
      $region53: #{tpu_custom_call.1} parent=5 // pred_check_branch
        %529 = sbr.rel (%p527) target = $region55
      $region54: #{tpu_custom_call.1} parent=5 // pred_region
        %s530 = ssub.s32 %s19, 2
        // Predicated region
        $region56: #{tpu_custom_call.1} parent=54 // pred_check
          %p531 = pneg %p111
        $region57: #{tpu_custom_call.1} parent=54 // pred_check_branch
          %533 = sbr.rel (%p531) target = $region59
        $region58: #{tpu_custom_call.1} parent=54 // pred_region
          %s534 = sand.u32 %s96, 1
          %s535 = scalar_lea.sflag [#allocation7], %s534
          %s536 = sand.u32 %s96, 1
          %s537 = smul.addr %s536, 16
          %s538 = scalar_lea.vmem [#allocation10], %s537
          %539 = dma.done %s535, 256
        $region59: #{tpu_custom_call.1} parent=54 // pred_fallthru
          _
      $region55: #{tpu_custom_call.1} parent=5 // pred_fallthru
        _
    $region6: #{tpu_custom_call.1} parent=1 // loop_footer
      %s23 = sadd.s32 1, %s19
    $region7: #{tpu_custom_call.1} parent=1 // loop_footer_branch
      %18 = sbr.rel target = $region3
    $region8: #{tpu_custom_call.1} parent=1 // loop_exit
      _
    %540 = vsyncpa [#allocation6], 1
    %s541 = scalar_lea.sflag [#allocation6], 1
    %542 = vsyncpa %s541, 1
    %543 = vsyncpa [#allocation9], 1
    %544 = vsyncpa [#allocation7], 1
    %s545 = scalar_lea.sflag [#allocation7], 1
    %546 = vsyncpa %s545, 1

// kernel: tpu_custom_call.1
$region0: #{tpu_custom_call.1}
  #allocation0 [shape = 'u32[]', space=smem, size = 0x4, offset = 0x4, fixed_abs, tag = 'smem constant byte address 0x4 - core index']
  #allocation1 [shape = 'u32[144,128]{1,0:T(1,128)}', space=vmem, size = 0x12000, scoped, tag = 'internal scratch']
  #allocation2 [shape = 'f32[16,34]{1,0:T(8,128)}', space=vmem, size = 0x2000, scoped, tag = 'scratch operand']
  #allocation3 [shape = 's32[1]{0}', space=sflag, size = 0x4, scoped, tag = 'scoped memory for tpu_custom_call.1']
  #allocation4 [shape = 'u8[512]{0}', space=smem, size = 0x200, scoped, tag = 'prefetched SMEM operand 0']
  %s0 = inlined_call_operand.hbm [shape: s32[128], index: 0, kind: input, shape index: {}]
  %s1 = inlined_call_operand.hbm [shape: f32[32,34], index: 1, kind: input, shape index: {}]
  %s2 = inlined_call_operand.hbm [shape: bf16[68,128], index: 2, kind: input, shape index: {}]
  %s3 = inlined_call_operand.vmem [shape: f32[1,128], index: 3, kind: input, shape index: {}]
  %s4 = inlined_call_operand.hbm [shape: f32[32,128], index: 4, kind: output, shape index: {}]
  %s5 = sld [smem:[#allocation0]]
  $region60: #{tpu_custom_call.1} parent=0
    _
  %s7 = ssub.s32 1, %s5
  %s8 = scalar_select 0, %s7, %s5
  %10 = dma.hbm_to_smem %s0, 16, [#allocation4], [#allocation3]
  %11 = dma.done [#allocation3], 16
  %12 = sfence
  $region1: #{tpu_custom_call.1} parent=0
    #allocation5 [shape = 'u8[16384]{0}', space=vmem, size = 0x4000, scoped, tag = 'input window, operand 1, single buffered']
    #allocation6 [shape = 's32[2]{0}', space=sflag, size = 0x8, scoped, tag = 'scoped memory for tpu_custom_call.1']
    #allocation7 [shape = 's32[2]{0}', space=sflag, size = 0x8, scoped, tag = 'scoped memory for tpu_custom_call.1']
    #allocation8 [shape = 'u8[18432]{0}', space=vmem, size = 0x4800, scoped, tag = 'input window, operand 2, single buffered']
    #allocation9 [shape = 's32[1]{0}', space=sflag, size = 0x4, scoped, tag = 'scoped memory for tpu_custom_call.1']
    #allocation10 [shape = 'u8[16384]{0}', space=vmem, size = 0x4000, scoped, tag = 'output window, operand 0']
    %13 = vsyncpa [#allocation6], 0
    %14 = vsyncpa [#allocation9], 0
    %15 = vsyncpa [#allocation7], 0
    %s16 = scalar_lea.sflag [#allocation7], 1
    %17 = vsyncpa %s16, 0
    loop: start=0, step=1, limit=4
    $region2: #{tpu_custom_call.1} parent=1 // loop_pre_header
      _
    $region3: #{tpu_custom_call.1} parent=1 // loop_header
      %s19 = sphi 0, %s23
      %p20 = scmp.ge.s32.totalorder %s19, 4
      %s27 = sphi 0, %s27
      %s29 = sphi 0, %s27
      %s30 = sphi 0, %s29
      %s44 = sphi 0, %s30
      %s48 = sphi 0, %s48
      %s50 = sphi 0, %s48
      %s51 = sphi 0, %s50
      %s65 = sphi 0, %s51
      %s69 = sphi 0, %s69
      %s71 = sphi 0, %s69
      %s72 = sphi 0, %s71
      %s86 = sphi 0, %s72
      %s92 = sphi 0, %s94
      %s95 = sphi 0, %s92
      %s96 = sphi 0, %s95
      %s112 = sphi 0, %s96
    $region4: #{tpu_custom_call.1} parent=1 // loop_header_branch
      %22 = sbr.rel (%p20) target = $region8
    $region5: #{tpu_custom_call.1} parent=1 // loop_body
      %s24 = ssub.s32 %s19, 1
      %s25 = ssub.s32 %s19, 2
      %s26 = sadd.s32 %s19, 1
      %s28 = sadd.s32 %s27, 1
      %p31 = scmp.eq.s32.totalorder %s19, 1
      %p32 = scmp.ne.s32.totalorder %s27, %s29
      %p33 = scmp.eq.s32.totalorder %s19, 0
      %p34 = por %p32, %p33
      %p35 = scmp.ne.s32.totalorder %s27, %s29
      %p36 = scmp.eq.s32.totalorder %s24, 1
      %p37 = por %p35, %p36
      %p38 = scmp.ne.s32.totalorder %s29, %s30
      %p39 = scmp.eq.s32.totalorder %s24, 0
      %p40 = por %p38, %p39
      %p41 = scmp.ne.s32.totalorder %s29, %s30
      %p42 = scmp.eq.s32.totalorder %s25, 1
      %p43 = por %p41, %p42
      %p45 = scmp.ne.s32.totalorder %s30, %s44
      %p46 = scmp.eq.s32.totalorder %s25, 0
      %p47 = por %p45, %p46
      %s49 = sadd.s32 %s48, 1
      %p52 = scmp.eq.s32.totalorder %s19, 1
      %p53 = scmp.ne.s32.totalorder %s48, %s50
      %p54 = scmp.eq.s32.totalorder %s19, 0
      %p55 = por %p53, %p54
      %p56 = scmp.ne.s32.totalorder %s48, %s50
      %p57 = scmp.eq.s32.totalorder %s24, 1
      %p58 = por %p56, %p57
      %p59 = scmp.ne.s32.totalorder %s50, %s51
      %p60 = scmp.eq.s32.totalorder %s24, 0
      %p61 = por %p59, %p60
      %p62 = scmp.ne.s32.totalorder %s50, %s51
      %p63 = scmp.eq.s32.totalorder %s25, 1
      %p64 = por %p62, %p63
      %p66 = scmp.ne.s32.totalorder %s51, %s65
      %p67 = scmp.eq.s32.totalorder %s25, 0
      %p68 = por %p66, %p67
      %s70 = sadd.s32 %s69, 1
      %p73 = scmp.eq.s32.totalorder %s19, 1
      %p74 = scmp.ne.s32.totalorder %s69, %s71
      %p75 = scmp.eq.s32.totalorder %s19, 0
      %p76 = por %p74, %p75
      %p77 = scmp.ne.s32.totalorder %s69, %s71
      %p78 = scmp.eq.s32.totalorder %s24, 1
      %p79 = por %p77, %p78
      %p80 = scmp.ne.s32.totalorder %s71, %s72
      %p81 = scmp.eq.s32.totalorder %s24, 0
      %p82 = por %p80, %p81
      %p83 = scmp.ne.s32.totalorder %s71, %s72
      %p84 = scmp.eq.s32.totalorder %s25, 1
      %p85 = por %p83, %p84
      %p87 = scmp.ne.s32.totalorder %s72, %s86
      %p88 = scmp.eq.s32.totalorder %s25, 0
      %p89 = por %p87, %p88
      %s90 = ssub.s32 %s19, %s26
      %p91 = scmp.eq.s32.totalorder %s90, 0
      %s93 = sadd.s32 %s92, 1
      %s94 = scalar_select %p91, %s92, %s93
      %p97 = pneg %p91
      %p98 = scmp.eq.s32.totalorder %s19, 1
      %p99 = por %p97, %p98
      %p100 = scmp.ne.s32.totalorder %s92, %s95
      %p101 = scmp.eq.s32.totalorder %s19, 0
      %p102 = por %p100, %p101
      %p103 = scmp.ne.s32.totalorder %s92, %s95
      %p104 = scmp.eq.s32.totalorder %s24, 1
      %p105 = por %p103, %p104
      %p106 = scmp.ne.s32.totalorder %s95, %s96
      %p107 = scmp.eq.s32.totalorder %s24, 0
      %p108 = por %p106, %p107
      %p109 = scmp.ne.s32.totalorder %s95, %s96
      %p110 = scmp.eq.s32.totalorder %s25, 1
      %p111 = por %p109, %p110
      %p113 = scmp.ne.s32.totalorder %s96, %s112
      %p114 = scmp.eq.s32.totalorder %s25, 0
      %p115 = por %p113, %p114
      %p116 = scmp.le.s32.totalorder 1, %s19
      %p117 = scmp.lt.s32.totalorder %s19, 3
      %p118 = pnand %p116, %p117
      %p119 = pneg %p118
      // Predicated region
      $region9: #{tpu_custom_call.1} parent=5 // pred_check
        _
      $region10: #{tpu_custom_call.1} parent=5 // pred_check_branch
        %121 = sbr.rel (%p118) target = $region12
      $region11: #{tpu_custom_call.1} parent=5 // pred_region
        %s122 = ssub.s32 %s19, 1
        // Predicated region
        $region13: #{tpu_custom_call.1} parent=11 // pred_check
          %p123 = pneg %p40
        $region14: #{tpu_custom_call.1} parent=11 // pred_check_branch
          %125 = sbr.rel (%p123) target = $region16
        $region15: #{tpu_custom_call.1} parent=11 // pred_region
          %s127 = ssub.s32 512, 512
          %128 = vsyncadd [#allocation6], %s127
          %s129 = sshll.u32 [#allocation5], 4
          %s130 = int_to_ptr.vmem [resolvable:$true] %s129
          %135 = dma.hbm_to_vmem [thread:$0]  %s1, 512, %s130, [#allocation6], 128, 128, 8
        $region16: #{tpu_custom_call.1} parent=11 // pred_fallthru
          _
        // Predicated region
        $region17: #{tpu_custom_call.1} parent=11 // pred_check
          %p136 = pneg %p61
        $region18: #{tpu_custom_call.1} parent=11 // pred_check_branch
          %138 = sbr.rel (%p136) target = $region20
        $region19: #{tpu_custom_call.1} parent=11 // pred_region
          %s140 = ssub.s32 576, 576
          %141 = vsyncadd [#allocation9], %s140
          %s142 = sshll.u32 [#allocation8], 4
          %s143 = int_to_ptr.vmem [resolvable:$true] %s142
          %148 = dma.hbm_to_vmem [thread:$0]  %s2, 576, %s143, [#allocation9], 64, 64, 4
        $region20: #{tpu_custom_call.1} parent=11 // pred_fallthru
          _
        // Predicated region
        $region21: #{tpu_custom_call.1} parent=11 // pred_check
          %p149 = pneg %p82
        $region22: #{tpu_custom_call.1} parent=11 // pred_check_branch
          %151 = sbr.rel (%p149) target = $region24
        $region23: #{tpu_custom_call.1} parent=11 // pred_region
          _
        $region24: #{tpu_custom_call.1} parent=11 // pred_fallthru
          _
      $region12: #{tpu_custom_call.1} parent=5 // pred_fallthru
        _
      %p152 = scmp.lt.s32.totalorder %s19, 2
      // Predicated region
      $region25: #{tpu_custom_call.1} parent=5 // pred_check
        %p153 = pneg %p152
      $region26: #{tpu_custom_call.1} parent=5 // pred_check_branch
        %155 = sbr.rel (%p153) target = $region28
      $region27: #{tpu_custom_call.1} parent=5 // pred_region
        _
      $region28: #{tpu_custom_call.1} parent=5 // pred_fallthru
        _
      %p156 = scmp.le.s32.totalorder 1, %s19
      %p157 = scmp.lt.s32.totalorder %s19, 3
      %p158 = pnand %p156, %p157
      %p159 = pneg %p158
      // Predicated region
      $region29: #{tpu_custom_call.1} parent=5 // pred_check
        _
      $region30: #{tpu_custom_call.1} parent=5 // pred_check_branch
        %161 = sbr.rel (%p158) target = $region32
      $region31: #{tpu_custom_call.1} parent=5 // pred_region
        %s162 = ssub.s32 %s19, 1
        // Predicated region
        $region33: #{tpu_custom_call.1} parent=31 // pred_check
          %p163 = pneg %p40
        $region34: #{tpu_custom_call.1} parent=31 // pred_check_branch
          %165 = sbr.rel (%p163) target = $region36
        $region35: #{tpu_custom_call.1} parent=31 // pred_region
          %166 = dma.done [#allocation6], 512
        $region36: #{tpu_custom_call.1} parent=31 // pred_fallthru
          _
        // Predicated region
        $region37: #{tpu_custom_call.1} parent=31 // pred_check
          %p167 = pneg %p61
        $region38: #{tpu_custom_call.1} parent=31 // pred_check_branch
          %169 = sbr.rel (%p167) target = $region40
        $region39: #{tpu_custom_call.1} parent=31 // pred_region
          %170 = dma.done [#allocation9], 576
        $region40: #{tpu_custom_call.1} parent=31 // pred_fallthru
          _
        %p171 = pneg %p40
        %p172 = pneg %p37
        %p173 = pneg %p61
        %p174 = pneg %p58
        %p175 = pneg %p82
        %p176 = pneg %p79
        %p177 = pneg %p108
        %p178 = pneg %p105
        %s179 = sand.u32 %s95, 1
        %s180 = scalar_lea.sflag [#allocation7], %s179
        %s181 = sand.u32 %s95, 1
        %s182 = smul.addr %s181, 16
        %s183 = scalar_lea.vmem [#allocation10], %s182
        %s184 = smul.u32 2, %s24
        %s186 = smul.u32 %s24, 16
        loop: start=0, step=1, limit=2
        $region41: #{tpu_custom_call.1} parent=31 // loop_pre_header
          _
        $region42: #{tpu_custom_call.1} parent=31 // loop_header
          %s188 = sphi 0, %s192
          %p189 = scmp.ge.s32.totalorder %s188, 2
        $region43: #{tpu_custom_call.1} parent=31 // loop_header_branch
          %191 = sbr.rel (%p189) target = $region47
        $region44: #{tpu_custom_call.1} parent=31 // loop_body
          %s193 = smul.u32 %s188, 8
          %s194 = sadd.s32 %s186, %s193
          %s195 = smul.u32 %s194, 4
          %s196 = sld [smem:[#allocation4 + %s195]]
          %s197 = scalar_lea.vmem [#allocation5], %s196
          %v198 = vld [vmem:[%s197] sm:$0x1]
          %s199 = sadd.s32 %s195, 1
          %s200 = sld [smem:[#allocation4 + %s199]]
          %s201 = scalar_lea.vmem [#allocation5], %s200
          %v202 = vld [vmem:[%s201] sm:$0x1]
          %v203 = vadd.f32 %v198, %v202
          %s204 = sadd.s32 %s195, 2
          %s205 = sld [smem:[#allocation4 + %s204]]
          %s206 = scalar_lea.vmem [#allocation5], %s205
          %v207 = vld [vmem:[%s206] sm:$0x1]
          %v208 = vadd.f32 %v203, %v207
          %s209 = sadd.s32 %s195, 3
          %s210 = sld [smem:[#allocation4 + %s209]]
          %s211 = scalar_lea.vmem [#allocation5], %s210
          %v212 = vld [vmem:[%s211] sm:$0x1]
          %v213 = vadd.f32 %v208, %v212
          %s214 = sadd.s32 %s194, 1
          %s215 = smul.u32 %s214, 4
          %s216 = sld [smem:[#allocation4 + %s215]]
          %s217 = scalar_lea.vmem [#allocation5], %s216
          %v218 = vld [vmem:[%s217] sm:$0x1]
          %s219 = sadd.s32 %s215, 1
          %s220 = sld [smem:[#allocation4 + %s219]]
          %s221 = scalar_lea.vmem [#allocation5], %s220
          %v222 = vld [vmem:[%s221] sm:$0x1]
          %v223 = vadd.f32 %v218, %v222
          %s224 = sadd.s32 %s215, 2
          %s225 = sld [smem:[#allocation4 + %s224]]
          %s226 = scalar_lea.vmem [#allocation5], %s225
          %v227 = vld [vmem:[%s226] sm:$0x1]
          %v228 = vadd.f32 %v223, %v227
          %s229 = sadd.s32 %s215, 3
          %s230 = sld [smem:[#allocation4 + %s229]]
          %s231 = scalar_lea.vmem [#allocation5], %s230
          %v232 = vld [vmem:[%s231] sm:$0x1]
          %v233 = vadd.f32 %v228, %v232
          %s234 = sadd.s32 %s194, 2
          %s235 = smul.u32 %s234, 4
          %s236 = sld [smem:[#allocation4 + %s235]]
          %s237 = scalar_lea.vmem [#allocation5], %s236
          %v238 = vld [vmem:[%s237] sm:$0x1]
          %s239 = sadd.s32 %s235, 1
          %s240 = sld [smem:[#allocation4 + %s239]]
          %s241 = scalar_lea.vmem [#allocation5], %s240
          %v242 = vld [vmem:[%s241] sm:$0x1]
          %v243 = vadd.f32 %v238, %v242
          %s244 = sadd.s32 %s235, 2
          %s245 = sld [smem:[#allocation4 + %s244]]
          %s246 = scalar_lea.vmem [#allocation5], %s245
          %v247 = vld [vmem:[%s246] sm:$0x1]
          %v248 = vadd.f32 %v243, %v247
          %s249 = sadd.s32 %s235, 3
          %s250 = sld [smem:[#allocation4 + %s249]]
          %s251 = scalar_lea.vmem [#allocation5], %s250
          %v252 = vld [vmem:[%s251] sm:$0x1]
          %v253 = vadd.f32 %v248, %v252
          %s254 = sadd.s32 %s194, 3
          %s255 = smul.u32 %s254, 4
          %s256 = sld [smem:[#allocation4 + %s255]]
          %s257 = scalar_lea.vmem [#allocation5], %s256
          %v258 = vld [vmem:[%s257] sm:$0x1]
          %s259 = sadd.s32 %s255, 1
          %s260 = sld [smem:[#allocation4 + %s259]]
          %s261 = scalar_lea.vmem [#allocation5], %s260
          %v262 = vld [vmem:[%s261] sm:$0x1]
          %v263 = vadd.f32 %v258, %v262
          %s264 = sadd.s32 %s255, 2
          %s265 = sld [smem:[#allocation4 + %s264]]
          %s266 = scalar_lea.vmem [#allocation5], %s265
          %v267 = vld [vmem:[%s266] sm:$0x1]
          %v268 = vadd.f32 %v263, %v267
          %s269 = sadd.s32 %s255, 3
          %s270 = sld [smem:[#allocation4 + %s269]]
          %s271 = scalar_lea.vmem [#allocation5], %s270
          %v272 = vld [vmem:[%s271] sm:$0x1]
          %v273 = vadd.f32 %v268, %v272
          %s274 = sadd.s32 %s194, 4
          %s275 = smul.u32 %s274, 4
          %s276 = sld [smem:[#allocation4 + %s275]]
          %s277 = scalar_lea.vmem [#allocation5], %s276
          %v278 = vld [vmem:[%s277] sm:$0x1]
          %s279 = sadd.s32 %s275, 1
          %s280 = sld [smem:[#allocation4 + %s279]]
          %s281 = scalar_lea.vmem [#allocation5], %s280
          %v282 = vld [vmem:[%s281] sm:$0x1]
          %v283 = vadd.f32 %v278, %v282
          %s284 = sadd.s32 %s275, 2
          %s285 = sld [smem:[#allocation4 + %s284]]
          %s286 = scalar_lea.vmem [#allocation5], %s285
          %v287 = vld [vmem:[%s286] sm:$0x1]
          %v288 = vadd.f32 %v283, %v287
          %s289 = sadd.s32 %s275, 3
          %s290 = sld [smem:[#allocation4 + %s289]]
          %s291 = scalar_lea.vmem [#allocation5], %s290
          %v292 = vld [vmem:[%s291] sm:$0x1]
          %v293 = vadd.f32 %v288, %v292
          %s294 = sadd.s32 %s194, 5
          %s295 = smul.u32 %s294, 4
          %s296 = sld [smem:[#allocation4 + %s295]]
          %s297 = scalar_lea.vmem [#allocation5], %s296
          %v298 = vld [vmem:[%s297] sm:$0x1]
          %s299 = sadd.s32 %s295, 1
          %s300 = sld [smem:[#allocation4 + %s299]]
          %s301 = scalar_lea.vmem [#allocation5], %s300
          %v302 = vld [vmem:[%s301] sm:$0x1]
          %v303 = vadd.f32 %v298, %v302
          %s304 = sadd.s32 %s295, 2
          %s305 = sld [smem:[#allocation4 + %s304]]
          %s306 = scalar_lea.vmem [#allocation5], %s305
          %v307 = vld [vmem:[%s306] sm:$0x1]
          %v308 = vadd.f32 %v303, %v307
          %s309 = sadd.s32 %s295, 3
          %s310 = sld [smem:[#allocation4 + %s309]]
          %s311 = scalar_lea.vmem [#allocation5], %s310
          %v312 = vld [vmem:[%s311] sm:$0x1]
          %v313 = vadd.f32 %v308, %v312
          %s314 = sadd.s32 %s194, 6
          %s315 = smul.u32 %s314, 4
          %s316 = sld [smem:[#allocation4 + %s315]]
          %s317 = scalar_lea.vmem [#allocation5], %s316
          %v318 = vld [vmem:[%s317] sm:$0x1]
          %s319 = sadd.s32 %s315, 1
          %s320 = sld [smem:[#allocation4 + %s319]]
          %s321 = scalar_lea.vmem [#allocation5], %s320
          %v322 = vld [vmem:[%s321] sm:$0x1]
          %v323 = vadd.f32 %v318, %v322
          %s324 = sadd.s32 %s315, 2
          %s325 = sld [smem:[#allocation4 + %s324]]
          %s326 = scalar_lea.vmem [#allocation5], %s325
          %v327 = vld [vmem:[%s326] sm:$0x1]
          %v328 = vadd.f32 %v323, %v327
          %s329 = sadd.s32 %s315, 3
          %s330 = sld [smem:[#allocation4 + %s329]]
          %s331 = scalar_lea.vmem [#allocation5], %s330
          %v332 = vld [vmem:[%s331] sm:$0x1]
          %v333 = vadd.f32 %v328, %v332
          %s334 = sadd.s32 %s194, 7
          %s335 = smul.u32 %s334, 4
          %s336 = sld [smem:[#allocation4 + %s335]]
          %s337 = scalar_lea.vmem [#allocation5], %s336
          %v338 = vld [vmem:[%s337] sm:$0x1]
          %s339 = sadd.s32 %s335, 1
          %s340 = sld [smem:[#allocation4 + %s339]]
          %s341 = scalar_lea.vmem [#allocation5], %s340
          %v342 = vld [vmem:[%s341] sm:$0x1]
          %v343 = vadd.f32 %v338, %v342
          %s344 = sadd.s32 %s335, 2
          %s345 = sld [smem:[#allocation4 + %s344]]
          %s346 = scalar_lea.vmem [#allocation5], %s345
          %v347 = vld [vmem:[%s346] sm:$0x1]
          %v348 = vadd.f32 %v343, %v347
          %s349 = sadd.s32 %s335, 3
          %s350 = sld [smem:[#allocation4 + %s349]]
          %s351 = scalar_lea.vmem [#allocation5], %s350
          %v352 = vld [vmem:[%s351] sm:$0x1]
          %v353 = vadd.f32 %v348, %v352
          %v355 = vrot.slane %v233, 7
          %v358 = vrot.slane %v253, 6
          %v361 = vrot.slane %v273, 5
          %v364 = vrot.slane %v293, 4
          %v367 = vrot.slane %v313, 3
          %v370 = vrot.slane %v333, 2
          %v373 = vrot.slane %v353, 1
          %vm375 = vcmask 1040384
          %v376 = vsel %vm375, %v213, %v355
          %vm377 = vcmask 1041408
          %v378 = vsel %vm377, %v376, %v358
          %vm379 = vcmask 1042432
          %v380 = vsel %vm379, %v378, %v361
          %vm381 = vcmask 1043456
          %v382 = vsel %vm381, %v380, %v364
          %vm383 = vcmask 1044480
          %v384 = vsel %vm383, %v382, %v367
          %vm385 = vcmask 1045504
          %v386 = vsel %vm385, %v384, %v370
          %vm387 = vcmask 1046528
          %v388 = vsel %vm387, %v386, %v373
          %s389 = scalar_lea.vmem [#allocation2], %s193
          %vm390 = vcmask 277504
          %391 = vst.msk [vmem:[%s389] sm:$0xff] %vm390, %v388
        $region45: #{tpu_custom_call.1} parent=31 // loop_footer
          %s192 = sadd.s32 1, %s188
        $region46: #{tpu_custom_call.1} parent=31 // loop_footer_branch
          %187 = sbr.rel target = $region42
        $region47: #{tpu_custom_call.1} parent=31 // loop_exit
          _
        %s392 = scalar_lea.vmem [#allocation5], %s186
        %v393 = vld [vmem:[%s392] sm:$0xff]
        %v394 = vld [vmem:[%s392 + $0x8] sm:$0xff]
        %v395 = vld [vmem:[#allocation2] sm:$0xff]
        %v396 = vld [vmem:[#allocation2 + $0x8] sm:$0xff]
        %399 = vrot.lane.b32.xlu0 %v395, 34
        %v400 = vpop.permute.xlu0 %399
        %401 = vrot.lane.b32.xlu0 %v396, 34
        %v402 = vpop.permute.xlu0 %401
        %vm405 = vcmask 277504
        %v406 = vsel %vm405, %v393, %v400
        %v407 = vsel %vm405, %v394, %v402
        %v408 = vpack.c.bf16 %v407, %v406
        %v409 = vld [vmem:[#allocation8] sm:$0xf]
        %v410 = vld [vmem:[#allocation8 + $0x4] sm:$0xf]
        %v411 = vld [vmem:[#allocation8 + $0x8] sm:$0xf]
        %v412 = vld [vmem:[#allocation8 + $0xc] sm:$0xf]
        %v413 = vld [vmem:[#allocation8 + $0x10] sm:$0xf]
        %v414 = vld [vmem:[#allocation8 + $0x14] sm:$0xf]
        %v415 = vld [vmem:[#allocation8 + $0x18] sm:$0xf]
        %v416 = vld [vmem:[#allocation8 + $0x1c] sm:$0xf]
        %v417 = vld [vmem:[#allocation8 + $0x20] sm:$0x3]
        %v418 = vld [vmem:[%s3] sm:$0x1]
        %v420 = vlaneseq
        %v421 = vshrl.u32 %v420, 7
        %v422 = vsub.s32 0, %v421
        %v423 = vrot.slane %v418, %v422
        %v434 = vunpack.c.l.b16 %v409
        %v435 = vunpack.c.l.b16 %v410
        %v436 = vunpack.c.l.b16 %v411
        %v437 = vunpack.c.l.b16 %v412
        %v438 = vunpack.c.l.b16 %v413
        %v439 = vunpack.c.l.b16 %v414
        %v440 = vunpack.c.l.b16 %v415
        %v441 = vunpack.c.l.b16 %v416
        %v442 = vunpack.c.l.b16 %v417
        %v443 = vpack.c.b16 %v435, %v434
        %v444 = vpack.c.b16 %v437, %v436
        %v445 = vpack.c.b16 %v439, %v438
        %v446 = vpack.c.b16 %v441, %v440
        %v447 = vpack.c.b16 %v442, %v442
        %vm452 = vcmask 556032
        %v454 = vsel %vm452, %v408, 0
        %vm456 = vcmask 1041408
        %v458 = vsel %vm456, %v447, 0
        %460 = vmatprep.subr.bf16.mxu0 0
        %461 = vmatpush1.bf16.msra.mxu0 %v443
        %462 = vmatprep.subr.bf16.mxu0 0
        %463 = vmatpush1.bf16.msra.mxu0 %v444
        %464 = vmatprep.subr.bf16.mxu0 0
        %465 = vmatpush1.bf16.msra.mxu0 %v445
        %466 = vmatprep.subr.bf16.mxu0 0
        %467 = vmatpush1.bf16.msra.mxu0 %v446
        %468 = vmatprep.subr.bf16.mxu0 0
        %469 = vmatpush1.bf16.msra.mxu0 %v458
        %470 = vmatprep.subr.bf16.mxu0 0
        %471 = vmatpush1.bf16.msra.mxu0 0
        %472 = vmatprep.subr.bf16.mxu0 0
        %473 = vmatpush1.bf16.msra.mxu0 0
        %474 = vmatprep.subr.bf16.mxu0 0
        %475 = vmatpush1.bf16.msra.mxu0 0
        %476 = vmatprep.subr.bf16.mxu0 0
        %477 = vmatpush1.bf16.msra.mxu0 0
        %478 = vmatprep.subr.bf16.mxu0 0
        %479 = vmatpush1.bf16.msra.mxu0 0
        %480 = vmatprep.subr.bf16.mxu0 0
        %481 = vmatpush1.bf16.msra.mxu0 0
        %482 = vmatprep.subr.bf16.mxu0 0
        %483 = vmatpush1.bf16.msra.mxu0 0
        %484 = vmatprep.subr.bf16.mxu0 0
        %485 = vmatpush1.bf16.msra.mxu0 0
        %486 = vmatprep.subr.bf16.mxu0 0
        %487 = vmatpush1.bf16.msra.mxu0 0
        %488 = vmatprep.subr.bf16.mxu0 0
        %489 = vmatpush1.bf16.msra.mxu0 0
        %490 = vmatprep.subr.bf16.mxu0 0
        %491 = vmatpush1.bf16.msra.mxu0 0
        %492 = vmatprep.mubr.bf16.mxu0 0
        %493 = vmatmul.mubr.bf16.gmra.mrb[0].mxu0 %v454
        %v494 = vpop.f32.mrb[0].mxu0
        %v495 = vadd.f32 %v423, %v494
        %v496 = vpop.f32.mrb[0].mxu0
        %v497 = vpop.f32.mrb[0].mxu0
        %v498 = vadd.f32 %v423, %v497
        %v499 = vpop.f32.mrb[0].mxu0
        %500 = vdwg.mxu0
        %v501 = vmax.f32 %v495, 0.0
        %v502 = vmax.f32 %v498, 0.0
        %503 = vst [vmem:[%s183] sm:$0xff] %v501
        %504 = vst [vmem:[%s183 + $0x8] sm:$0xff] %v502
        %s505 = sand.u32 %s95, 1
        %s506 = scalar_lea.sflag [#allocation7], %s505
        %s507 = sand.u32 %s95, 1
        %s508 = smul.addr %s507, 16
        %s509 = scalar_lea.vmem [#allocation10], %s508
        // Predicated region
        $region48: #{tpu_custom_call.1} parent=31 // pred_check
          %p510 = pneg %p105
        $region49: #{tpu_custom_call.1} parent=31 // pred_check_branch
          %512 = sbr.rel (%p510) target = $region51
        $region50: #{tpu_custom_call.1} parent=31 // pred_region
          %s513 = smul.u32 2, %s24
          %s515 = ssub.s32 256, 256
          %516 = vsyncadd %s506, %s515
          %s517 = smul.addr %s513, 128
          %s518 = scalar_lea.hbm %s4, %s517
          %s519 = sshll.u32 %s509, 4
          %s520 = int_to_ptr.vmem [resolvable:$true] %s519
          %525 = dma.vmem_to_hbm [thread:$0]  %s520, 256, %s518, %s506, 128, 128, 8
        $region51: #{tpu_custom_call.1} parent=31 // pred_fallthru
          _
      $region32: #{tpu_custom_call.1} parent=5 // pred_fallthru
        _
      %p526 = scmp.le.s32.totalorder 2, %s19
      // Predicated region
      $region52: #{tpu_custom_call.1} parent=5 // pred_check
        %p527 = pneg %p526
      $region53: #{tpu_custom_call.1} parent=5 // pred_check_branch
        %529 = sbr.rel (%p527) target = $region55
      $region54: #{tpu_custom_call.1} parent=5 // pred_region
        %s530 = ssub.s32 %s19, 2
        // Predicated region
        $region56: #{tpu_custom_call.1} parent=54 // pred_check
          %p531 = pneg %p111
        $region57: #{tpu_custom_call.1} parent=54 // pred_check_branch
          %533 = sbr.rel (%p531) target = $region59
        $region58: #{tpu_custom_call.1} parent=54 // pred_region
          %s534 = sand.u32 %s96, 1
          %s535 = scalar_lea.sflag [#allocation7], %s534
          %s536 = sand.u32 %s96, 1
          %s537 = smul.addr %s536, 16
          %s538 = scalar_lea.vmem [#allocation10], %s537
          %539 = dma.done %s535, 256
        $region59: #{tpu_custom_call.1} parent=54 // pred_fallthru
          _
      $region55: #{tpu_custom_call.1} parent=5 // pred_fallthru
        _
    $region6: #{tpu_custom_call.1} parent=1 // loop_footer
      %s23 = sadd.s32 1, %s19
    $region7: #{tpu_custom_call.1} parent=1 // loop_footer_branch
      %18 = sbr.rel target = $region3
    $region8: #{tpu_custom_call.1} parent=1 // loop_exit
      _
    %540 = vsyncpa [#allocation6], 1
    %s541 = scalar_lea.sflag [#allocation6], 1
    %542 = vsyncpa %s541, 1
    %543 = vsyncpa [#allocation9], 1
    %544 = vsyncpa [#allocation7], 1
    %s545 = scalar_lea.sflag [#allocation7], 1
    %546 = vsyncpa %s545, 1

</llo_original>
